<compile_context>
chip_gen: v5e
topology: v5e:2x2
jax: 0.10.0
libtpu: 0.0.40
codegen_flags: <defaults>
</compile_context>

<pallas_src>
import functools

import jax
import jax.numpy as jnp
from jax.experimental import pallas as pl
from jax.experimental.pallas import tpu as pltpu


# ---------------------------------------------------------------------------
# Pallas kernel
# ---------------------------------------------------------------------------
def convblockskip_kernel(x_ref, w_ref, p_ref, o_ref, *,
                         dil, width, height, fw, batch_norm, eps=1e-5):
    """All activations use layout (N, C, S) with S = H*W on the 128-lane axis.

    x_ref : (N, Cin, S)           raw (unpadded) input
    w_ref : (2, FW*Cin, Co, 1)    w_ref[conv, k*Cin+ci] is a (Co, 1) column
    p_ref : (6, Co, 1)            rows: b1, g1, be1, b2, g2, be2
    o_ref : (N, Co, S)            lane-dense output
    """
    N, Cin, S = x_ref.shape
    Co = o_ref.shape[1]
    f32 = jnp.float32

    x = x_ref[...].astype(f32)              # one lane-dense full-array load

    # Static per-tap row shifts and validity masks ('same' zero padding),
    # shared by both convolutions.  Output row h reads input row h + s,
    # s = k*dil - pad_top, valid iff 0 <= h + s < H.
    total = dil * (fw - 1)
    pad_top = total // 2
    lane = jax.lax.broadcasted_iota(jnp.int32, (1, 1, S), 2)
    taps = []
    for k in range(fw):
        s = k * dil - pad_top
        lo, hi = max(0, -s), min(height, height - s)
        mask = None
        if lo > 0 or hi < height:
            mask = ((lane >= lo * width) & (lane < hi * width)).astype(f32)
        taps.append((s, mask))

    def conv_same(t, conv_idx, init):
        """Dilated (FW,1) 'same' conv along H as FW*Cin broadcast FMAs on the
        VPU; the k*dil row shifts are XLU rolls of the whole channel block."""
        in_ch = t.shape[1]
        acc = jnp.broadcast_to(init, (N, Co, S)).astype(f32)
        for k, (s, mask) in enumerate(taps):        # FW, Cin small & static
            if s == 0:
                tk = t
            else:
                tk = pltpu.roll(t, shift=(-s * width) % S, axis=2)
                if mask is not None:
                    tk = tk * mask                  # zero the wrapped rows
            for ci in range(in_ch):
                col = w_ref[conv_idx, k * in_ch + ci].astype(f32)[None]  # (1,Co,1)
                acc = acc + col * tk[:, ci:ci + 1, :]
        return acc

    def bn_train(t, g_col, be_col):
        """BatchNorm2d training forward: biased batch stats per channel,
        two-pass (centred) variance, applied as one per-channel FMA."""
        inv_cnt = 1.0 / float(N * S)
        mean = jnp.sum(t, axis=(0, 2), keepdims=True) * inv_cnt
        d = t - mean
        var = jnp.sum(d * d, axis=(0, 2), keepdims=True) * inv_cnt
        scale = g_col * jax.lax.rsqrt(var + eps)
        return d * scale + be_col

    # ---- conv1 (+bias) -> relu -> [bn1] ------------------------------------
    a = conv_same(x, 0, p_ref[0].astype(f32)[None])
    a = jnp.maximum(a, 0.0)
    if batch_norm:
        a = bn_train(a, p_ref[1].astype(f32)[None], p_ref[2].astype(f32)[None])

    # ---- conv2 (+bias) -> + identity (lane-aligned x) -> relu -> [bn2] -----
    o = conv_same(a, 1, x + p_ref[3].astype(f32)[None])
    o = jnp.maximum(o, 0.0)
    if batch_norm:
        o = bn_train(o, p_ref[4].astype(f32)[None], p_ref[5].astype(f32)[None])

    o_ref[...] = o.astype(o_ref.dtype)


# ---------------------------------------------------------------------------
# Wrapper (PyTorch NCHW in / NCHW out; only free reshapes outside the kernel)
# ---------------------------------------------------------------------------
def conv_block_skip_forward(x_nchw, params, *, filter_width, dilation,
                            batch_norm):
    w1, b1, g1, be1, w2, b2, g2, be2 = params
    N, Cin, H, W = x_nchw.shape
    Co = w1.shape[0]
    if Cin != Co:
        raise ValueError("skip connection requires input_filters == nb_filters")
    S = H * W
    if S % 128 != 0:
        # TODO(synk): route non-lane-dense H*W to the XLA reference path.
        raise ValueError("H*W must be a multiple of 128 for the lane-dense kernel")

    # Lane-dense activation layout (free reshape of a contiguous NCHW array).
    x_flat = x_nchw.reshape(N, Cin, S)

    # Pack both conv weights into one (2, FW*Cin, Co, 1) tensor and the six
    # per-channel vectors into one (6, Co, 1) tensor: 3 DMAs instead of 9.
    def to_cols(wt):  # torch (Co, Ci, FW, 1) -> (FW*Ci, Co, 1), row = k*Ci+ci
        return jnp.transpose(wt[:, :, :, 0], (2, 1, 0)).reshape(
            filter_width * wt.shape[1], wt.shape[0], 1)
    w_pack = jnp.stack([to_cols(w1), to_cols(w2)], axis=0).astype(jnp.float32)
    p_pack = jnp.stack([b1, g1, be1, b2, g2, be2],
                       axis=0).astype(jnp.float32).reshape(6, Co, 1)

    # Scoped-VMEM request: ~2x the real working set (x + out + ~2 f32
    # temporaries), capped below the physical per-core VMEM of this generation.
    try:
        vmem_cap = pltpu.get_tpu_info().vmem_capacity_bytes
    except Exception:
        vmem_cap = 64 << 20                      # conservative (v7x per-core)
    work_bytes = 4 * (x_flat.size + 3 * N * Co * S + w_pack.size + p_pack.size)
    if 2 * work_bytes > int(0.75 * vmem_cap):
        # TODO(synk): gridded two-phase (BN stats reduce + apply) variant for
        # inputs that do not fit in one core's VMEM.
        raise ValueError("input too large for the single-block ConvBlockSkip kernel")
    vmem_limit = int(min(max(2 * work_bytes, 16 << 20), int(0.75 * vmem_cap)))

    vmem = pl.BlockSpec(memory_space=pltpu.MemorySpace.VMEM)
    out_flat = pl.pallas_call(
        functools.partial(convblockskip_kernel, dil=dilation, width=W,
                          height=H, fw=filter_width, batch_norm=batch_norm),
        out_shape=jax.ShapeDtypeStruct((N, Co, S), x_nchw.dtype),
        in_specs=[vmem, vmem, vmem],
        out_specs=vmem,
        compiler_params=pltpu.CompilerParams(vmem_limit_bytes=vmem_limit),
    )(x_flat, w_pack, p_pack)
    return out_flat.reshape(N, Co, H, W)


# ---------------------------------------------------------------------------
# Pure-JAX reference (matches PyTorch forward in train mode)
# ---------------------------------------------------------------------------
def reference_forward(x, params, *, filter_width, dilation, batch_norm):
    w1, b1, g1, be1, w2, b2, g2, be2 = params
    total = dilation * (filter_width - 1)
    pt, pb = total // 2, total - total // 2

    def conv(t, w, b):
        y = jax.lax.conv_general_dilated(
            t, w, window_strides=(1, 1), padding=((pt, pb), (0, 0)),
            rhs_dilation=(dilation, 1),
            dimension_numbers=('NCHW', 'OIHW', 'NCHW'))
        return y + b[None, :, None, None]

    def bn(t, g, be):
        m = jnp.mean(t, axis=(0, 2, 3), keepdims=True)
        v = jnp.mean((t - m) ** 2, axis=(0, 2, 3), keepdims=True)
        return (t - m) / jnp.sqrt(v + 1e-5) * g[None, :, None, None] \
            + be[None, :, None, None]

    identity = x
    out = jnp.maximum(conv(x, w1, b1), 0.0)
    if batch_norm:
        out = bn(out, g1, be1)
    out = conv(out, w2, b2) + identity
    out = jnp.maximum(out, 0.0)
    if batch_norm:
        out = bn(out, g2, be2)
    return out


# ---------------------------------------------------------------------------
if __name__ == "__main__":
    # ConvBlockSkip(window_size=16, filter_width=3, input_filters=8,
    #               nb_filters=8, dilation=2, batch_norm=...)
    filter_width, nb_filters, dilation = 3, 8, 2
    input_filters = nb_filters          # skip connection requires equal channels
    N, H, W = 2, 16, 16                 # NCHW input (2, 8, 16, 16); H*W = 256

    key = jax.random.PRNGKey(0)
    ks = jax.random.split(key, 9)

    def u(k, shape, scale):
        return jax.random.uniform(k, shape, jnp.float32, -scale, scale)

    fan1 = input_filters * filter_width
    fan2 = nb_filters * filter_width
    w1 = u(ks[0], (nb_filters, input_filters, filter_width, 1), fan1 ** -0.5)
    b1 = u(ks[1], (nb_filters,), fan1 ** -0.5)
    w2 = u(ks[2], (nb_filters, nb_filters, filter_width, 1), fan2 ** -0.5)
    b2 = u(ks[3], (nb_filters,), fan2 ** -0.5)
    g1 = 1.0 + 0.1 * u(ks[4], (nb_filters,), 1.0)
    be1 = 0.1 * u(ks[5], (nb_filters,), 1.0)
    g2 = 1.0 + 0.1 * u(ks[6], (nb_filters,), 1.0)
    be2 = 0.1 * u(ks[7], (nb_filters,), 1.0)
    params = (w1, b1, g1, be1, w2, b2, g2, be2)

    x = jax.random.normal(ks[8], (N, input_filters, H, W), jnp.float32)

    for batch_norm in (True, False):
        out = conv_block_skip_forward(x, params, filter_width=filter_width,
                                      dilation=dilation, batch_norm=batch_norm)
        out = jax.block_until_ready(out)

        ref = reference_forward(x, params, filter_width=filter_width,
                                dilation=dilation, batch_norm=batch_norm)
        ref = jax.block_until_ready(ref)

        assert out.shape == ref.shape, (batch_norm, out.shape, ref.shape)
        assert jnp.allclose(out, ref, atol=1e-3, rtol=1e-3), \
            (batch_norm, float(jnp.max(jnp.abs(out - ref))))

    print("KERNEL_OK")
</pallas_src>

<mosaic_0001>
module attributes {stable_mosaic.version = 11 : i64} {
  func.func @convblockskip_kernel(%arg0: memref<2x8x256xf32, #tpu.memory_space<vmem>>, %arg1: memref<2x24x8x1xf32, #tpu.memory_space<vmem>>, %arg2: memref<6x8x1xf32, #tpu.memory_space<vmem>>, %arg3: memref<2x8x256xf32, #tpu.memory_space<vmem>>) attributes {dimension_semantics = [], scalar_prefetch = 0 : i64, scratch_operands = 0 : i64, tpu.core_type = #tpu.core_type<tc>} {
    %c0 = arith.constant 0 : index
    %c0_0 = arith.constant 0 : index
    %c0_1 = arith.constant 0 : index
    %0 = vector.load %arg0[%c0, %c0_0, %c0_1] : memref<2x8x256xf32, #tpu.memory_space<vmem>>, vector<2x8x256xf32>
    %1 = tpu.iota {dimensions = array<i32: 2>} : vector<1x1x256xi32>
    %c32_i32 = arith.constant 32 : i32
    %2 = vector.broadcast %c32_i32 : i32 to vector<1x1x256xi32>
    %3 = arith.cmpi sge, %1, %2 : vector<1x1x256xi32>
    %c256_i32 = arith.constant 256 : i32
    %4 = vector.broadcast %c256_i32 : i32 to vector<1x1x256xi32>
    %5 = arith.cmpi slt, %1, %4 : vector<1x1x256xi32>
    %6 = arith.andi %3, %5 : vector<1x1x256xi1>
    %7 = arith.extui %6 : vector<1x1x256xi1> to vector<1x1x256xi32>
    %8 = arith.sitofp %7 : vector<1x1x256xi32> to vector<1x1x256xf32>
    %c0_i32 = arith.constant 0 : i32
    %9 = vector.broadcast %c0_i32 : i32 to vector<1x1x256xi32>
    %10 = arith.cmpi sge, %1, %9 : vector<1x1x256xi32>
    %c224_i32 = arith.constant 224 : i32
    %11 = vector.broadcast %c224_i32 : i32 to vector<1x1x256xi32>
    %12 = arith.cmpi slt, %1, %11 : vector<1x1x256xi32>
    %13 = arith.andi %10, %12 : vector<1x1x256xi1>
    %14 = arith.extui %13 : vector<1x1x256xi1> to vector<1x1x256xi32>
    %15 = arith.sitofp %14 : vector<1x1x256xi32> to vector<1x1x256xf32>
    %c0_2 = arith.constant 0 : index
    %c0_3 = arith.constant 0 : index
    %c0_4 = arith.constant 0 : index
    %16 = vector.load %arg2[%c0_2, %c0_3, %c0_4] : memref<6x8x1xf32, #tpu.memory_space<vmem>>, vector<1x8x1xf32>
    %17 = vector.shape_cast %16 : vector<1x8x1xf32> to vector<8x1xf32>
    %18 = vector.shape_cast %17 : vector<8x1xf32> to vector<1x8x1xf32>
    %19 = vector.shape_cast %18 : vector<1x8x1xf32> to vector<1x8x1xf32>
    %20 = vector.broadcast %19 : vector<1x8x1xf32> to vector<2x8x256xf32>
    %c32_i32_5 = arith.constant 32 : i32
    %21 = tpu.dynamic_rotate %0 by %c32_i32_5 dim 2 : vector<2x8x256xf32>, i32 -> vector<2x8x256xf32>
    %22 = vector.broadcast %8 : vector<1x1x256xf32> to vector<2x8x256xf32>
    %23 = arith.mulf %21, %22 : vector<2x8x256xf32>
    %c0_6 = arith.constant 0 : index
    %c0_7 = arith.constant 0 : index
    %c0_8 = arith.constant 0 : index
    %c0_9 = arith.constant 0 : index
    %24 = vector.load %arg1[%c0_6, %c0_7, %c0_8, %c0_9] : memref<2x24x8x1xf32, #tpu.memory_space<vmem>>, vector<1x1x8x1xf32>
    %25 = vector.shape_cast %24 : vector<1x1x8x1xf32> to vector<8x1xf32>
    %26 = vector.shape_cast %25 : vector<8x1xf32> to vector<1x8x1xf32>
    %27 = vector.extract_strided_slice %23 {offsets = [0, 0, 0], sizes = [2, 1, 256], strides = [1, 1, 1]} : vector<2x8x256xf32> to vector<2x1x256xf32>
    %28 = vector.broadcast %26 : vector<1x8x1xf32> to vector<2x8x256xf32>
    %29 = vector.broadcast %27 : vector<2x1x256xf32> to vector<2x8x256xf32>
    %30 = arith.mulf %28, %29 : vector<2x8x256xf32>
    %31 = arith.addf %20, %30 : vector<2x8x256xf32>
    %c0_10 = arith.constant 0 : index
    %c1 = arith.constant 1 : index
    %c0_11 = arith.constant 0 : index
    %c0_12 = arith.constant 0 : index
    %32 = vector.load %arg1[%c0_10, %c1, %c0_11, %c0_12] : memref<2x24x8x1xf32, #tpu.memory_space<vmem>>, vector<1x1x8x1xf32>
    %33 = vector.shape_cast %32 : vector<1x1x8x1xf32> to vector<8x1xf32>
    %34 = vector.shape_cast %33 : vector<8x1xf32> to vector<1x8x1xf32>
    %35 = vector.extract_strided_slice %23 {offsets = [0, 1, 0], sizes = [2, 1, 256], strides = [1, 1, 1]} : vector<2x8x256xf32> to vector<2x1x256xf32>
    %36 = vector.broadcast %34 : vector<1x8x1xf32> to vector<2x8x256xf32>
    %37 = vector.broadcast %35 : vector<2x1x256xf32> to vector<2x8x256xf32>
    %38 = arith.mulf %36, %37 : vector<2x8x256xf32>
    %39 = arith.addf %31, %38 : vector<2x8x256xf32>
    %c0_13 = arith.constant 0 : index
    %c2 = arith.constant 2 : index
    %c0_14 = arith.constant 0 : index
    %c0_15 = arith.constant 0 : index
    %40 = vector.load %arg1[%c0_13, %c2, %c0_14, %c0_15] : memref<2x24x8x1xf32, #tpu.memory_space<vmem>>, vector<1x1x8x1xf32>
    %41 = vector.shape_cast %40 : vector<1x1x8x1xf32> to vector<8x1xf32>
    %42 = vector.shape_cast %41 : vector<8x1xf32> to vector<1x8x1xf32>
    %43 = vector.extract_strided_slice %23 {offsets = [0, 2, 0], sizes = [2, 1, 256], strides = [1, 1, 1]} : vector<2x8x256xf32> to vector<2x1x256xf32>
    %44 = vector.broadcast %42 : vector<1x8x1xf32> to vector<2x8x256xf32>
    %45 = vector.broadcast %43 : vector<2x1x256xf32> to vector<2x8x256xf32>
    %46 = arith.mulf %44, %45 : vector<2x8x256xf32>
    %47 = arith.addf %39, %46 : vector<2x8x256xf32>
    %c0_16 = arith.constant 0 : index
    %c3 = arith.constant 3 : index
    %c0_17 = arith.constant 0 : index
    %c0_18 = arith.constant 0 : index
    %48 = vector.load %arg1[%c0_16, %c3, %c0_17, %c0_18] : memref<2x24x8x1xf32, #tpu.memory_space<vmem>>, vector<1x1x8x1xf32>
    %49 = vector.shape_cast %48 : vector<1x1x8x1xf32> to vector<8x1xf32>
    %50 = vector.shape_cast %49 : vector<8x1xf32> to vector<1x8x1xf32>
    %51 = vector.extract_strided_slice %23 {offsets = [0, 3, 0], sizes = [2, 1, 256], strides = [1, 1, 1]} : vector<2x8x256xf32> to vector<2x1x256xf32>
    %52 = vector.broadcast %50 : vector<1x8x1xf32> to vector<2x8x256xf32>
    %53 = vector.broadcast %51 : vector<2x1x256xf32> to vector<2x8x256xf32>
    %54 = arith.mulf %52, %53 : vector<2x8x256xf32>
    %55 = arith.addf %47, %54 : vector<2x8x256xf32>
    %c0_19 = arith.constant 0 : index
    %c4 = arith.constant 4 : index
    %c0_20 = arith.constant 0 : index
    %c0_21 = arith.constant 0 : index
    %56 = vector.load %arg1[%c0_19, %c4, %c0_20, %c0_21] : memref<2x24x8x1xf32, #tpu.memory_space<vmem>>, vector<1x1x8x1xf32>
    %57 = vector.shape_cast %56 : vector<1x1x8x1xf32> to vector<8x1xf32>
    %58 = vector.shape_cast %57 : vector<8x1xf32> to vector<1x8x1xf32>
    %59 = vector.extract_strided_slice %23 {offsets = [0, 4, 0], sizes = [2, 1, 256], strides = [1, 1, 1]} : vector<2x8x256xf32> to vector<2x1x256xf32>
    %60 = vector.broadcast %58 : vector<1x8x1xf32> to vector<2x8x256xf32>
    %61 = vector.broadcast %59 : vector<2x1x256xf32> to vector<2x8x256xf32>
    %62 = arith.mulf %60, %61 : vector<2x8x256xf32>
    %63 = arith.addf %55, %62 : vector<2x8x256xf32>
    %c0_22 = arith.constant 0 : index
    %c5 = arith.constant 5 : index
    %c0_23 = arith.constant 0 : index
    %c0_24 = arith.constant 0 : index
    %64 = vector.load %arg1[%c0_22, %c5, %c0_23, %c0_24] : memref<2x24x8x1xf32, #tpu.memory_space<vmem>>, vector<1x1x8x1xf32>
    %65 = vector.shape_cast %64 : vector<1x1x8x1xf32> to vector<8x1xf32>
    %66 = vector.shape_cast %65 : vector<8x1xf32> to vector<1x8x1xf32>
    %67 = vector.extract_strided_slice %23 {offsets = [0, 5, 0], sizes = [2, 1, 256], strides = [1, 1, 1]} : vector<2x8x256xf32> to vector<2x1x256xf32>
    %68 = vector.broadcast %66 : vector<1x8x1xf32> to vector<2x8x256xf32>
    %69 = vector.broadcast %67 : vector<2x1x256xf32> to vector<2x8x256xf32>
    %70 = arith.mulf %68, %69 : vector<2x8x256xf32>
    %71 = arith.addf %63, %70 : vector<2x8x256xf32>
    %c0_25 = arith.constant 0 : index
    %c6 = arith.constant 6 : index
    %c0_26 = arith.constant 0 : index
    %c0_27 = arith.constant 0 : index
    %72 = vector.load %arg1[%c0_25, %c6, %c0_26, %c0_27] : memref<2x24x8x1xf32, #tpu.memory_space<vmem>>, vector<1x1x8x1xf32>
    %73 = vector.shape_cast %72 : vector<1x1x8x1xf32> to vector<8x1xf32>
    %74 = vector.shape_cast %73 : vector<8x1xf32> to vector<1x8x1xf32>
    %75 = vector.extract_strided_slice %23 {offsets = [0, 6, 0], sizes = [2, 1, 256], strides = [1, 1, 1]} : vector<2x8x256xf32> to vector<2x1x256xf32>
    %76 = vector.broadcast %74 : vector<1x8x1xf32> to vector<2x8x256xf32>
    %77 = vector.broadcast %75 : vector<2x1x256xf32> to vector<2x8x256xf32>
    %78 = arith.mulf %76, %77 : vector<2x8x256xf32>
    %79 = arith.addf %71, %78 : vector<2x8x256xf32>
    %c0_28 = arith.constant 0 : index
    %c7 = arith.constant 7 : index
    %c0_29 = arith.constant 0 : index
    %c0_30 = arith.constant 0 : index
    %80 = vector.load %arg1[%c0_28, %c7, %c0_29, %c0_30] : memref<2x24x8x1xf32, #tpu.memory_space<vmem>>, vector<1x1x8x1xf32>
    %81 = vector.shape_cast %80 : vector<1x1x8x1xf32> to vector<8x1xf32>
    %82 = vector.shape_cast %81 : vector<8x1xf32> to vector<1x8x1xf32>
    %83 = vector.extract_strided_slice %23 {offsets = [0, 7, 0], sizes = [2, 1, 256], strides = [1, 1, 1]} : vector<2x8x256xf32> to vector<2x1x256xf32>
    %84 = vector.broadcast %82 : vector<1x8x1xf32> to vector<2x8x256xf32>
    %85 = vector.broadcast %83 : vector<2x1x256xf32> to vector<2x8x256xf32>
    %86 = arith.mulf %84, %85 : vector<2x8x256xf32>
    %87 = arith.addf %79, %86 : vector<2x8x256xf32>
    %c0_31 = arith.constant 0 : index
    %c8 = arith.constant 8 : index
    %c0_32 = arith.constant 0 : index
    %c0_33 = arith.constant 0 : index
    %88 = vector.load %arg1[%c0_31, %c8, %c0_32, %c0_33] : memref<2x24x8x1xf32, #tpu.memory_space<vmem>>, vector<1x1x8x1xf32>
    %89 = vector.shape_cast %88 : vector<1x1x8x1xf32> to vector<8x1xf32>
    %90 = vector.shape_cast %89 : vector<8x1xf32> to vector<1x8x1xf32>
    %91 = vector.extract_strided_slice %0 {offsets = [0, 0, 0], sizes = [2, 1, 256], strides = [1, 1, 1]} : vector<2x8x256xf32> to vector<2x1x256xf32>
    %92 = vector.broadcast %90 : vector<1x8x1xf32> to vector<2x8x256xf32>
    %93 = vector.broadcast %91 : vector<2x1x256xf32> to vector<2x8x256xf32>
    %94 = arith.mulf %92, %93 : vector<2x8x256xf32>
    %95 = arith.addf %87, %94 : vector<2x8x256xf32>
    %c0_34 = arith.constant 0 : index
    %c9 = arith.constant 9 : index
    %c0_35 = arith.constant 0 : index
    %c0_36 = arith.constant 0 : index
    %96 = vector.load %arg1[%c0_34, %c9, %c0_35, %c0_36] : memref<2x24x8x1xf32, #tpu.memory_space<vmem>>, vector<1x1x8x1xf32>
    %97 = vector.shape_cast %96 : vector<1x1x8x1xf32> to vector<8x1xf32>
    %98 = vector.shape_cast %97 : vector<8x1xf32> to vector<1x8x1xf32>
    %99 = vector.extract_strided_slice %0 {offsets = [0, 1, 0], sizes = [2, 1, 256], strides = [1, 1, 1]} : vector<2x8x256xf32> to vector<2x1x256xf32>
    %100 = vector.broadcast %98 : vector<1x8x1xf32> to vector<2x8x256xf32>
    %101 = vector.broadcast %99 : vector<2x1x256xf32> to vector<2x8x256xf32>
    %102 = arith.mulf %100, %101 : vector<2x8x256xf32>
    %103 = arith.addf %95, %102 : vector<2x8x256xf32>
    %c0_37 = arith.constant 0 : index
    %c10 = arith.constant 10 : index
    %c0_38 = arith.constant 0 : index
    %c0_39 = arith.constant 0 : index
    %104 = vector.load %arg1[%c0_37, %c10, %c0_38, %c0_39] : memref<2x24x8x1xf32, #tpu.memory_space<vmem>>, vector<1x1x8x1xf32>
    %105 = vector.shape_cast %104 : vector<1x1x8x1xf32> to vector<8x1xf32>
    %106 = vector.shape_cast %105 : vector<8x1xf32> to vector<1x8x1xf32>
    %107 = vector.extract_strided_slice %0 {offsets = [0, 2, 0], sizes = [2, 1, 256], strides = [1, 1, 1]} : vector<2x8x256xf32> to vector<2x1x256xf32>
    %108 = vector.broadcast %106 : vector<1x8x1xf32> to vector<2x8x256xf32>
    %109 = vector.broadcast %107 : vector<2x1x256xf32> to vector<2x8x256xf32>
    %110 = arith.mulf %108, %109 : vector<2x8x256xf32>
    %111 = arith.addf %103, %110 : vector<2x8x256xf32>
    %c0_40 = arith.constant 0 : index
    %c11 = arith.constant 11 : index
    %c0_41 = arith.constant 0 : index
    %c0_42 = arith.constant 0 : index
    %112 = vector.load %arg1[%c0_40, %c11, %c0_41, %c0_42] : memref<2x24x8x1xf32, #tpu.memory_space<vmem>>, vector<1x1x8x1xf32>
    %113 = vector.shape_cast %112 : vector<1x1x8x1xf32> to vector<8x1xf32>
    %114 = vector.shape_cast %113 : vector<8x1xf32> to vector<1x8x1xf32>
    %115 = vector.extract_strided_slice %0 {offsets = [0, 3, 0], sizes = [2, 1, 256], strides = [1, 1, 1]} : vector<2x8x256xf32> to vector<2x1x256xf32>
    %116 = vector.broadcast %114 : vector<1x8x1xf32> to vector<2x8x256xf32>
    %117 = vector.broadcast %115 : vector<2x1x256xf32> to vector<2x8x256xf32>
    %118 = arith.mulf %116, %117 : vector<2x8x256xf32>
    %119 = arith.addf %111, %118 : vector<2x8x256xf32>
    %c0_43 = arith.constant 0 : index
    %c12 = arith.constant 12 : index
    %c0_44 = arith.constant 0 : index
    %c0_45 = arith.constant 0 : index
    %120 = vector.load %arg1[%c0_43, %c12, %c0_44, %c0_45] : memref<2x24x8x1xf32, #tpu.memory_space<vmem>>, vector<1x1x8x1xf32>
    %121 = vector.shape_cast %120 : vector<1x1x8x1xf32> to vector<8x1xf32>
    %122 = vector.shape_cast %121 : vector<8x1xf32> to vector<1x8x1xf32>
    %123 = vector.extract_strided_slice %0 {offsets = [0, 4, 0], sizes = [2, 1, 256], strides = [1, 1, 1]} : vector<2x8x256xf32> to vector<2x1x256xf32>
    %124 = vector.broadcast %122 : vector<1x8x1xf32> to vector<2x8x256xf32>
    %125 = vector.broadcast %123 : vector<2x1x256xf32> to vector<2x8x256xf32>
    %126 = arith.mulf %124, %125 : vector<2x8x256xf32>
    %127 = arith.addf %119, %126 : vector<2x8x256xf32>
    %c0_46 = arith.constant 0 : index
    %c13 = arith.constant 13 : index
    %c0_47 = arith.constant 0 : index
    %c0_48 = arith.constant 0 : index
    %128 = vector.load %arg1[%c0_46, %c13, %c0_47, %c0_48] : memref<2x24x8x1xf32, #tpu.memory_space<vmem>>, vector<1x1x8x1xf32>
    %129 = vector.shape_cast %128 : vector<1x1x8x1xf32> to vector<8x1xf32>
    %130 = vector.shape_cast %129 : vector<8x1xf32> to vector<1x8x1xf32>
    %131 = vector.extract_strided_slice %0 {offsets = [0, 5, 0], sizes = [2, 1, 256], strides = [1, 1, 1]} : vector<2x8x256xf32> to vector<2x1x256xf32>
    %132 = vector.broadcast %130 : vector<1x8x1xf32> to vector<2x8x256xf32>
    %133 = vector.broadcast %131 : vector<2x1x256xf32> to vector<2x8x256xf32>
    %134 = arith.mulf %132, %133 : vector<2x8x256xf32>
    %135 = arith.addf %127, %134 : vector<2x8x256xf32>
    %c0_49 = arith.constant 0 : index
    %c14 = arith.constant 14 : index
    %c0_50 = arith.constant 0 : index
    %c0_51 = arith.constant 0 : index
    %136 = vector.load %arg1[%c0_49, %c14, %c0_50, %c0_51] : memref<2x24x8x1xf32, #tpu.memory_space<vmem>>, vector<1x1x8x1xf32>
    %137 = vector.shape_cast %136 : vector<1x1x8x1xf32> to vector<8x1xf32>
    %138 = vector.shape_cast %137 : vector<8x1xf32> to vector<1x8x1xf32>
    %139 = vector.extract_strided_slice %0 {offsets = [0, 6, 0], sizes = [2, 1, 256], strides = [1, 1, 1]} : vector<2x8x256xf32> to vector<2x1x256xf32>
    %140 = vector.broadcast %138 : vector<1x8x1xf32> to vector<2x8x256xf32>
    %141 = vector.broadcast %139 : vector<2x1x256xf32> to vector<2x8x256xf32>
    %142 = arith.mulf %140, %141 : vector<2x8x256xf32>
    %143 = arith.addf %135, %142 : vector<2x8x256xf32>
    %c0_52 = arith.constant 0 : index
    %c15 = arith.constant 15 : index
    %c0_53 = arith.constant 0 : index
    %c0_54 = arith.constant 0 : index
    %144 = vector.load %arg1[%c0_52, %c15, %c0_53, %c0_54] : memref<2x24x8x1xf32, #tpu.memory_space<vmem>>, vector<1x1x8x1xf32>
    %145 = vector.shape_cast %144 : vector<1x1x8x1xf32> to vector<8x1xf32>
    %146 = vector.shape_cast %145 : vector<8x1xf32> to vector<1x8x1xf32>
    %147 = vector.extract_strided_slice %0 {offsets = [0, 7, 0], sizes = [2, 1, 256], strides = [1, 1, 1]} : vector<2x8x256xf32> to vector<2x1x256xf32>
    %148 = vector.broadcast %146 : vector<1x8x1xf32> to vector<2x8x256xf32>
    %149 = vector.broadcast %147 : vector<2x1x256xf32> to vector<2x8x256xf32>
    %150 = arith.mulf %148, %149 : vector<2x8x256xf32>
    %151 = arith.addf %143, %150 : vector<2x8x256xf32>
    %c224_i32_55 = arith.constant 224 : i32
    %152 = tpu.dynamic_rotate %0 by %c224_i32_55 dim 2 : vector<2x8x256xf32>, i32 -> vector<2x8x256xf32>
    %153 = vector.broadcast %15 : vector<1x1x256xf32> to vector<2x8x256xf32>
    %154 = arith.mulf %152, %153 : vector<2x8x256xf32>
    %c0_56 = arith.constant 0 : index
    %c16 = arith.constant 16 : index
    %c0_57 = arith.constant 0 : index
    %c0_58 = arith.constant 0 : index
    %155 = vector.load %arg1[%c0_56, %c16, %c0_57, %c0_58] : memref<2x24x8x1xf32, #tpu.memory_space<vmem>>, vector<1x1x8x1xf32>
    %156 = vector.shape_cast %155 : vector<1x1x8x1xf32> to vector<8x1xf32>
    %157 = vector.shape_cast %156 : vector<8x1xf32> to vector<1x8x1xf32>
    %158 = vector.extract_strided_slice %154 {offsets = [0, 0, 0], sizes = [2, 1, 256], strides = [1, 1, 1]} : vector<2x8x256xf32> to vector<2x1x256xf32>
    %159 = vector.broadcast %157 : vector<1x8x1xf32> to vector<2x8x256xf32>
    %160 = vector.broadcast %158 : vector<2x1x256xf32> to vector<2x8x256xf32>
    %161 = arith.mulf %159, %160 : vector<2x8x256xf32>
    %162 = arith.addf %151, %161 : vector<2x8x256xf32>
    %c0_59 = arith.constant 0 : index
    %c17 = arith.constant 17 : index
    %c0_60 = arith.constant 0 : index
    %c0_61 = arith.constant 0 : index
    %163 = vector.load %arg1[%c0_59, %c17, %c0_60, %c0_61] : memref<2x24x8x1xf32, #tpu.memory_space<vmem>>, vector<1x1x8x1xf32>
    %164 = vector.shape_cast %163 : vector<1x1x8x1xf32> to vector<8x1xf32>
    %165 = vector.shape_cast %164 : vector<8x1xf32> to vector<1x8x1xf32>
    %166 = vector.extract_strided_slice %154 {offsets = [0, 1, 0], sizes = [2, 1, 256], strides = [1, 1, 1]} : vector<2x8x256xf32> to vector<2x1x256xf32>
    %167 = vector.broadcast %165 : vector<1x8x1xf32> to vector<2x8x256xf32>
    %168 = vector.broadcast %166 : vector<2x1x256xf32> to vector<2x8x256xf32>
    %169 = arith.mulf %167, %168 : vector<2x8x256xf32>
    %170 = arith.addf %162, %169 : vector<2x8x256xf32>
    %c0_62 = arith.constant 0 : index
    %c18 = arith.constant 18 : index
    %c0_63 = arith.constant 0 : index
    %c0_64 = arith.constant 0 : index
    %171 = vector.load %arg1[%c0_62, %c18, %c0_63, %c0_64] : memref<2x24x8x1xf32, #tpu.memory_space<vmem>>, vector<1x1x8x1xf32>
    %172 = vector.shape_cast %171 : vector<1x1x8x1xf32> to vector<8x1xf32>
    %173 = vector.shape_cast %172 : vector<8x1xf32> to vector<1x8x1xf32>
    %174 = vector.extract_strided_slice %154 {offsets = [0, 2, 0], sizes = [2, 1, 256], strides = [1, 1, 1]} : vector<2x8x256xf32> to vector<2x1x256xf32>
    %175 = vector.broadcast %173 : vector<1x8x1xf32> to vector<2x8x256xf32>
    %176 = vector.broadcast %174 : vector<2x1x256xf32> to vector<2x8x256xf32>
    %177 = arith.mulf %175, %176 : vector<2x8x256xf32>
    %178 = arith.addf %170, %177 : vector<2x8x256xf32>
    %c0_65 = arith.constant 0 : index
    %c19 = arith.constant 19 : index
    %c0_66 = arith.constant 0 : index
    %c0_67 = arith.constant 0 : index
    %179 = vector.load %arg1[%c0_65, %c19, %c0_66, %c0_67] : memref<2x24x8x1xf32, #tpu.memory_space<vmem>>, vector<1x1x8x1xf32>
    %180 = vector.shape_cast %179 : vector<1x1x8x1xf32> to vector<8x1xf32>
    %181 = vector.shape_cast %180 : vector<8x1xf32> to vector<1x8x1xf32>
    %182 = vector.extract_strided_slice %154 {offsets = [0, 3, 0], sizes = [2, 1, 256], strides = [1, 1, 1]} : vector<2x8x256xf32> to vector<2x1x256xf32>
    %183 = vector.broadcast %181 : vector<1x8x1xf32> to vector<2x8x256xf32>
    %184 = vector.broadcast %182 : vector<2x1x256xf32> to vector<2x8x256xf32>
    %185 = arith.mulf %183, %184 : vector<2x8x256xf32>
    %186 = arith.addf %178, %185 : vector<2x8x256xf32>
    %c0_68 = arith.constant 0 : index
    %c20 = arith.constant 20 : index
    %c0_69 = arith.constant 0 : index
    %c0_70 = arith.constant 0 : index
    %187 = vector.load %arg1[%c0_68, %c20, %c0_69, %c0_70] : memref<2x24x8x1xf32, #tpu.memory_space<vmem>>, vector<1x1x8x1xf32>
    %188 = vector.shape_cast %187 : vector<1x1x8x1xf32> to vector<8x1xf32>
    %189 = vector.shape_cast %188 : vector<8x1xf32> to vector<1x8x1xf32>
    %190 = vector.extract_strided_slice %154 {offsets = [0, 4, 0], sizes = [2, 1, 256], strides = [1, 1, 1]} : vector<2x8x256xf32> to vector<2x1x256xf32>
    %191 = vector.broadcast %189 : vector<1x8x1xf32> to vector<2x8x256xf32>
    %192 = vector.broadcast %190 : vector<2x1x256xf32> to vector<2x8x256xf32>
    %193 = arith.mulf %191, %192 : vector<2x8x256xf32>
    %194 = arith.addf %186, %193 : vector<2x8x256xf32>
    %c0_71 = arith.constant 0 : index
    %c21 = arith.constant 21 : index
    %c0_72 = arith.constant 0 : index
    %c0_73 = arith.constant 0 : index
    %195 = vector.load %arg1[%c0_71, %c21, %c0_72, %c0_73] : memref<2x24x8x1xf32, #tpu.memory_space<vmem>>, vector<1x1x8x1xf32>
    %196 = vector.shape_cast %195 : vector<1x1x8x1xf32> to vector<8x1xf32>
    %197 = vector.shape_cast %196 : vector<8x1xf32> to vector<1x8x1xf32>
    %198 = vector.extract_strided_slice %154 {offsets = [0, 5, 0], sizes = [2, 1, 256], strides = [1, 1, 1]} : vector<2x8x256xf32> to vector<2x1x256xf32>
    %199 = vector.broadcast %197 : vector<1x8x1xf32> to vector<2x8x256xf32>
    %200 = vector.broadcast %198 : vector<2x1x256xf32> to vector<2x8x256xf32>
    %201 = arith.mulf %199, %200 : vector<2x8x256xf32>
    %202 = arith.addf %194, %201 : vector<2x8x256xf32>
    %c0_74 = arith.constant 0 : index
    %c22 = arith.constant 22 : index
    %c0_75 = arith.constant 0 : index
    %c0_76 = arith.constant 0 : index
    %203 = vector.load %arg1[%c0_74, %c22, %c0_75, %c0_76] : memref<2x24x8x1xf32, #tpu.memory_space<vmem>>, vector<1x1x8x1xf32>
    %204 = vector.shape_cast %203 : vector<1x1x8x1xf32> to vector<8x1xf32>
    %205 = vector.shape_cast %204 : vector<8x1xf32> to vector<1x8x1xf32>
    %206 = vector.extract_strided_slice %154 {offsets = [0, 6, 0], sizes = [2, 1, 256], strides = [1, 1, 1]} : vector<2x8x256xf32> to vector<2x1x256xf32>
    %207 = vector.broadcast %205 : vector<1x8x1xf32> to vector<2x8x256xf32>
    %208 = vector.broadcast %206 : vector<2x1x256xf32> to vector<2x8x256xf32>
    %209 = arith.mulf %207, %208 : vector<2x8x256xf32>
    %210 = arith.addf %202, %209 : vector<2x8x256xf32>
    %c0_77 = arith.constant 0 : index
    %c23 = arith.constant 23 : index
    %c0_78 = arith.constant 0 : index
    %c0_79 = arith.constant 0 : index
    %211 = vector.load %arg1[%c0_77, %c23, %c0_78, %c0_79] : memref<2x24x8x1xf32, #tpu.memory_space<vmem>>, vector<1x1x8x1xf32>
    %212 = vector.shape_cast %211 : vector<1x1x8x1xf32> to vector<8x1xf32>
    %213 = vector.shape_cast %212 : vector<8x1xf32> to vector<1x8x1xf32>
    %214 = vector.extract_strided_slice %154 {offsets = [0, 7, 0], sizes = [2, 1, 256], strides = [1, 1, 1]} : vector<2x8x256xf32> to vector<2x1x256xf32>
    %215 = vector.broadcast %213 : vector<1x8x1xf32> to vector<2x8x256xf32>
    %216 = vector.broadcast %214 : vector<2x1x256xf32> to vector<2x8x256xf32>
    %217 = arith.mulf %215, %216 : vector<2x8x256xf32>
    %218 = arith.addf %210, %217 : vector<2x8x256xf32>
    %cst = arith.constant 0.000000e+00 : f32
    %219 = vector.broadcast %cst : f32 to vector<2x8x256xf32>
    %220 = arith.maximumf %218, %219 : vector<2x8x256xf32>
    %c1_80 = arith.constant 1 : index
    %c0_81 = arith.constant 0 : index
    %c0_82 = arith.constant 0 : index
    %221 = vector.load %arg2[%c1_80, %c0_81, %c0_82] : memref<6x8x1xf32, #tpu.memory_space<vmem>>, vector<1x8x1xf32>
    %222 = vector.shape_cast %221 : vector<1x8x1xf32> to vector<8x1xf32>
    %223 = vector.shape_cast %222 : vector<8x1xf32> to vector<1x8x1xf32>
    %c2_83 = arith.constant 2 : index
    %c0_84 = arith.constant 0 : index
    %c0_85 = arith.constant 0 : index
    %224 = vector.load %arg2[%c2_83, %c0_84, %c0_85] : memref<6x8x1xf32, #tpu.memory_space<vmem>>, vector<1x8x1xf32>
    %225 = vector.shape_cast %224 : vector<1x8x1xf32> to vector<8x1xf32>
    %226 = vector.shape_cast %225 : vector<8x1xf32> to vector<1x8x1xf32>
    %cst_86 = arith.constant dense<0.000000e+00> : vector<8xf32>
    %227 = vector.multi_reduction <add>, %220, %cst_86 [0, 2] : vector<2x8x256xf32> to vector<8xf32>
    %228 = vector.shape_cast %227 : vector<8xf32> to vector<1x8x1xf32>
    %cst_87 = arith.constant 0.001953125 : f32
    %229 = vector.broadcast %cst_87 : f32 to vector<1x8x1xf32>
    %230 = arith.mulf %228, %229 : vector<1x8x1xf32>
    %231 = vector.broadcast %230 : vector<1x8x1xf32> to vector<2x8x256xf32>
    %232 = arith.subf %220, %231 : vector<2x8x256xf32>
    %233 = arith.mulf %232, %232 : vector<2x8x256xf32>
    %cst_88 = arith.constant dense<0.000000e+00> : vector<8xf32>
    %234 = vector.multi_reduction <add>, %233, %cst_88 [0, 2] : vector<2x8x256xf32> to vector<8xf32>
    %235 = vector.shape_cast %234 : vector<8xf32> to vector<1x8x1xf32>
    %cst_89 = arith.constant 0.001953125 : f32
    %236 = vector.broadcast %cst_89 : f32 to vector<1x8x1xf32>
    %237 = arith.mulf %235, %236 : vector<1x8x1xf32>
    %cst_90 = arith.constant 9.99999974E-6 : f32
    %238 = vector.broadcast %cst_90 : f32 to vector<1x8x1xf32>
    %239 = arith.addf %237, %238 : vector<1x8x1xf32>
    %240 = math.rsqrt %239 : vector<1x8x1xf32>
    %241 = arith.mulf %223, %240 : vector<1x8x1xf32>
    %242 = vector.broadcast %241 : vector<1x8x1xf32> to vector<2x8x256xf32>
    %243 = arith.mulf %232, %242 : vector<2x8x256xf32>
    %244 = vector.broadcast %226 : vector<1x8x1xf32> to vector<2x8x256xf32>
    %245 = arith.addf %243, %244 : vector<2x8x256xf32>
    %c3_91 = arith.constant 3 : index
    %c0_92 = arith.constant 0 : index
    %c0_93 = arith.constant 0 : index
    %246 = vector.load %arg2[%c3_91, %c0_92, %c0_93] : memref<6x8x1xf32, #tpu.memory_space<vmem>>, vector<1x8x1xf32>
    %247 = vector.shape_cast %246 : vector<1x8x1xf32> to vector<8x1xf32>
    %248 = vector.shape_cast %247 : vector<8x1xf32> to vector<1x8x1xf32>
    %249 = vector.broadcast %248 : vector<1x8x1xf32> to vector<2x8x256xf32>
    %250 = arith.addf %0, %249 : vector<2x8x256xf32>
    %c32_i32_94 = arith.constant 32 : i32
    %251 = tpu.dynamic_rotate %245 by %c32_i32_94 dim 2 : vector<2x8x256xf32>, i32 -> vector<2x8x256xf32>
    %252 = vector.broadcast %8 : vector<1x1x256xf32> to vector<2x8x256xf32>
    %253 = arith.mulf %251, %252 : vector<2x8x256xf32>
    %c1_95 = arith.constant 1 : index
    %c0_96 = arith.constant 0 : index
    %c0_97 = arith.constant 0 : index
    %c0_98 = arith.constant 0 : index
    %254 = vector.load %arg1[%c1_95, %c0_96, %c0_97, %c0_98] : memref<2x24x8x1xf32, #tpu.memory_space<vmem>>, vector<1x1x8x1xf32>
    %255 = vector.shape_cast %254 : vector<1x1x8x1xf32> to vector<8x1xf32>
    %256 = vector.shape_cast %255 : vector<8x1xf32> to vector<1x8x1xf32>
    %257 = vector.extract_strided_slice %253 {offsets = [0, 0, 0], sizes = [2, 1, 256], strides = [1, 1, 1]} : vector<2x8x256xf32> to vector<2x1x256xf32>
    %258 = vector.broadcast %256 : vector<1x8x1xf32> to vector<2x8x256xf32>
    %259 = vector.broadcast %257 : vector<2x1x256xf32> to vector<2x8x256xf32>
    %260 = arith.mulf %258, %259 : vector<2x8x256xf32>
    %261 = arith.addf %250, %260 : vector<2x8x256xf32>
    %c1_99 = arith.constant 1 : index
    %c1_100 = arith.constant 1 : index
    %c0_101 = arith.constant 0 : index
    %c0_102 = arith.constant 0 : index
    %262 = vector.load %arg1[%c1_99, %c1_100, %c0_101, %c0_102] : memref<2x24x8x1xf32, #tpu.memory_space<vmem>>, vector<1x1x8x1xf32>
    %263 = vector.shape_cast %262 : vector<1x1x8x1xf32> to vector<8x1xf32>
    %264 = vector.shape_cast %263 : vector<8x1xf32> to vector<1x8x1xf32>
    %265 = vector.extract_strided_slice %253 {offsets = [0, 1, 0], sizes = [2, 1, 256], strides = [1, 1, 1]} : vector<2x8x256xf32> to vector<2x1x256xf32>
    %266 = vector.broadcast %264 : vector<1x8x1xf32> to vector<2x8x256xf32>
    %267 = vector.broadcast %265 : vector<2x1x256xf32> to vector<2x8x256xf32>
    %268 = arith.mulf %266, %267 : vector<2x8x256xf32>
    %269 = arith.addf %261, %268 : vector<2x8x256xf32>
    %c1_103 = arith.constant 1 : index
    %c2_104 = arith.constant 2 : index
    %c0_105 = arith.constant 0 : index
    %c0_106 = arith.constant 0 : index
    %270 = vector.load %arg1[%c1_103, %c2_104, %c0_105, %c0_106] : memref<2x24x8x1xf32, #tpu.memory_space<vmem>>, vector<1x1x8x1xf32>
    %271 = vector.shape_cast %270 : vector<1x1x8x1xf32> to vector<8x1xf32>
    %272 = vector.shape_cast %271 : vector<8x1xf32> to vector<1x8x1xf32>
    %273 = vector.extract_strided_slice %253 {offsets = [0, 2, 0], sizes = [2, 1, 256], strides = [1, 1, 1]} : vector<2x8x256xf32> to vector<2x1x256xf32>
    %274 = vector.broadcast %272 : vector<1x8x1xf32> to vector<2x8x256xf32>
    %275 = vector.broadcast %273 : vector<2x1x256xf32> to vector<2x8x256xf32>
    %276 = arith.mulf %274, %275 : vector<2x8x256xf32>
    %277 = arith.addf %269, %276 : vector<2x8x256xf32>
    %c1_107 = arith.constant 1 : index
    %c3_108 = arith.constant 3 : index
    %c0_109 = arith.constant 0 : index
    %c0_110 = arith.constant 0 : index
    %278 = vector.load %arg1[%c1_107, %c3_108, %c0_109, %c0_110] : memref<2x24x8x1xf32, #tpu.memory_space<vmem>>, vector<1x1x8x1xf32>
    %279 = vector.shape_cast %278 : vector<1x1x8x1xf32> to vector<8x1xf32>
    %280 = vector.shape_cast %279 : vector<8x1xf32> to vector<1x8x1xf32>
    %281 = vector.extract_strided_slice %253 {offsets = [0, 3, 0], sizes = [2, 1, 256], strides = [1, 1, 1]} : vector<2x8x256xf32> to vector<2x1x256xf32>
    %282 = vector.broadcast %280 : vector<1x8x1xf32> to vector<2x8x256xf32>
    %283 = vector.broadcast %281 : vector<2x1x256xf32> to vector<2x8x256xf32>
    %284 = arith.mulf %282, %283 : vector<2x8x256xf32>
    %285 = arith.addf %277, %284 : vector<2x8x256xf32>
    %c1_111 = arith.constant 1 : index
    %c4_112 = arith.constant 4 : index
    %c0_113 = arith.constant 0 : index
    %c0_114 = arith.constant 0 : index
    %286 = vector.load %arg1[%c1_111, %c4_112, %c0_113, %c0_114] : memref<2x24x8x1xf32, #tpu.memory_space<vmem>>, vector<1x1x8x1xf32>
    %287 = vector.shape_cast %286 : vector<1x1x8x1xf32> to vector<8x1xf32>
    %288 = vector.shape_cast %287 : vector<8x1xf32> to vector<1x8x1xf32>
    %289 = vector.extract_strided_slice %253 {offsets = [0, 4, 0], sizes = [2, 1, 256], strides = [1, 1, 1]} : vector<2x8x256xf32> to vector<2x1x256xf32>
    %290 = vector.broadcast %288 : vector<1x8x1xf32> to vector<2x8x256xf32>
    %291 = vector.broadcast %289 : vector<2x1x256xf32> to vector<2x8x256xf32>
    %292 = arith.mulf %290, %291 : vector<2x8x256xf32>
    %293 = arith.addf %285, %292 : vector<2x8x256xf32>
    %c1_115 = arith.constant 1 : index
    %c5_116 = arith.constant 5 : index
    %c0_117 = arith.constant 0 : index
    %c0_118 = arith.constant 0 : index
    %294 = vector.load %arg1[%c1_115, %c5_116, %c0_117, %c0_118] : memref<2x24x8x1xf32, #tpu.memory_space<vmem>>, vector<1x1x8x1xf32>
    %295 = vector.shape_cast %294 : vector<1x1x8x1xf32> to vector<8x1xf32>
    %296 = vector.shape_cast %295 : vector<8x1xf32> to vector<1x8x1xf32>
    %297 = vector.extract_strided_slice %253 {offsets = [0, 5, 0], sizes = [2, 1, 256], strides = [1, 1, 1]} : vector<2x8x256xf32> to vector<2x1x256xf32>
    %298 = vector.broadcast %296 : vector<1x8x1xf32> to vector<2x8x256xf32>
    %299 = vector.broadcast %297 : vector<2x1x256xf32> to vector<2x8x256xf32>
    %300 = arith.mulf %298, %299 : vector<2x8x256xf32>
    %301 = arith.addf %293, %300 : vector<2x8x256xf32>
    %c1_119 = arith.constant 1 : index
    %c6_120 = arith.constant 6 : index
    %c0_121 = arith.constant 0 : index
    %c0_122 = arith.constant 0 : index
    %302 = vector.load %arg1[%c1_119, %c6_120, %c0_121, %c0_122] : memref<2x24x8x1xf32, #tpu.memory_space<vmem>>, vector<1x1x8x1xf32>
    %303 = vector.shape_cast %302 : vector<1x1x8x1xf32> to vector<8x1xf32>
    %304 = vector.shape_cast %303 : vector<8x1xf32> to vector<1x8x1xf32>
    %305 = vector.extract_strided_slice %253 {offsets = [0, 6, 0], sizes = [2, 1, 256], strides = [1, 1, 1]} : vector<2x8x256xf32> to vector<2x1x256xf32>
    %306 = vector.broadcast %304 : vector<1x8x1xf32> to vector<2x8x256xf32>
    %307 = vector.broadcast %305 : vector<2x1x256xf32> to vector<2x8x256xf32>
    %308 = arith.mulf %306, %307 : vector<2x8x256xf32>
    %309 = arith.addf %301, %308 : vector<2x8x256xf32>
    %c1_123 = arith.constant 1 : index
    %c7_124 = arith.constant 7 : index
    %c0_125 = arith.constant 0 : index
    %c0_126 = arith.constant 0 : index
    %310 = vector.load %arg1[%c1_123, %c7_124, %c0_125, %c0_126] : memref<2x24x8x1xf32, #tpu.memory_space<vmem>>, vector<1x1x8x1xf32>
    %311 = vector.shape_cast %310 : vector<1x1x8x1xf32> to vector<8x1xf32>
    %312 = vector.shape_cast %311 : vector<8x1xf32> to vector<1x8x1xf32>
    %313 = vector.extract_strided_slice %253 {offsets = [0, 7, 0], sizes = [2, 1, 256], strides = [1, 1, 1]} : vector<2x8x256xf32> to vector<2x1x256xf32>
    %314 = vector.broadcast %312 : vector<1x8x1xf32> to vector<2x8x256xf32>
    %315 = vector.broadcast %313 : vector<2x1x256xf32> to vector<2x8x256xf32>
    %316 = arith.mulf %314, %315 : vector<2x8x256xf32>
    %317 = arith.addf %309, %316 : vector<2x8x256xf32>
    %c1_127 = arith.constant 1 : index
    %c8_128 = arith.constant 8 : index
    %c0_129 = arith.constant 0 : index
    %c0_130 = arith.constant 0 : index
    %318 = vector.load %arg1[%c1_127, %c8_128, %c0_129, %c0_130] : memref<2x24x8x1xf32, #tpu.memory_space<vmem>>, vector<1x1x8x1xf32>
    %319 = vector.shape_cast %318 : vector<1x1x8x1xf32> to vector<8x1xf32>
    %320 = vector.shape_cast %319 : vector<8x1xf32> to vector<1x8x1xf32>
    %321 = vector.extract_strided_slice %245 {offsets = [0, 0, 0], sizes = [2, 1, 256], strides = [1, 1, 1]} : vector<2x8x256xf32> to vector<2x1x256xf32>
    %322 = vector.broadcast %320 : vector<1x8x1xf32> to vector<2x8x256xf32>
    %323 = vector.broadcast %321 : vector<2x1x256xf32> to vector<2x8x256xf32>
    %324 = arith.mulf %322, %323 : vector<2x8x256xf32>
    %325 = arith.addf %317, %324 : vector<2x8x256xf32>
    %c1_131 = arith.constant 1 : index
    %c9_132 = arith.constant 9 : index
    %c0_133 = arith.constant 0 : index
    %c0_134 = arith.constant 0 : index
    %326 = vector.load %arg1[%c1_131, %c9_132, %c0_133, %c0_134] : memref<2x24x8x1xf32, #tpu.memory_space<vmem>>, vector<1x1x8x1xf32>
    %327 = vector.shape_cast %326 : vector<1x1x8x1xf32> to vector<8x1xf32>
    %328 = vector.shape_cast %327 : vector<8x1xf32> to vector<1x8x1xf32>
    %329 = vector.extract_strided_slice %245 {offsets = [0, 1, 0], sizes = [2, 1, 256], strides = [1, 1, 1]} : vector<2x8x256xf32> to vector<2x1x256xf32>
    %330 = vector.broadcast %328 : vector<1x8x1xf32> to vector<2x8x256xf32>
    %331 = vector.broadcast %329 : vector<2x1x256xf32> to vector<2x8x256xf32>
    %332 = arith.mulf %330, %331 : vector<2x8x256xf32>
    %333 = arith.addf %325, %332 : vector<2x8x256xf32>
    %c1_135 = arith.constant 1 : index
    %c10_136 = arith.constant 10 : index
    %c0_137 = arith.constant 0 : index
    %c0_138 = arith.constant 0 : index
    %334 = vector.load %arg1[%c1_135, %c10_136, %c0_137, %c0_138] : memref<2x24x8x1xf32, #tpu.memory_space<vmem>>, vector<1x1x8x1xf32>
    %335 = vector.shape_cast %334 : vector<1x1x8x1xf32> to vector<8x1xf32>
    %336 = vector.shape_cast %335 : vector<8x1xf32> to vector<1x8x1xf32>
    %337 = vector.extract_strided_slice %245 {offsets = [0, 2, 0], sizes = [2, 1, 256], strides = [1, 1, 1]} : vector<2x8x256xf32> to vector<2x1x256xf32>
    %338 = vector.broadcast %336 : vector<1x8x1xf32> to vector<2x8x256xf32>
    %339 = vector.broadcast %337 : vector<2x1x256xf32> to vector<2x8x256xf32>
    %340 = arith.mulf %338, %339 : vector<2x8x256xf32>
    %341 = arith.addf %333, %340 : vector<2x8x256xf32>
    %c1_139 = arith.constant 1 : index
    %c11_140 = arith.constant 11 : index
    %c0_141 = arith.constant 0 : index
    %c0_142 = arith.constant 0 : index
    %342 = vector.load %arg1[%c1_139, %c11_140, %c0_141, %c0_142] : memref<2x24x8x1xf32, #tpu.memory_space<vmem>>, vector<1x1x8x1xf32>
    %343 = vector.shape_cast %342 : vector<1x1x8x1xf32> to vector<8x1xf32>
    %344 = vector.shape_cast %343 : vector<8x1xf32> to vector<1x8x1xf32>
    %345 = vector.extract_strided_slice %245 {offsets = [0, 3, 0], sizes = [2, 1, 256], strides = [1, 1, 1]} : vector<2x8x256xf32> to vector<2x1x256xf32>
    %346 = vector.broadcast %344 : vector<1x8x1xf32> to vector<2x8x256xf32>
    %347 = vector.broadcast %345 : vector<2x1x256xf32> to vector<2x8x256xf32>
    %348 = arith.mulf %346, %347 : vector<2x8x256xf32>
    %349 = arith.addf %341, %348 : vector<2x8x256xf32>
    %c1_143 = arith.constant 1 : index
    %c12_144 = arith.constant 12 : index
    %c0_145 = arith.constant 0 : index
    %c0_146 = arith.constant 0 : index
    %350 = vector.load %arg1[%c1_143, %c12_144, %c0_145, %c0_146] : memref<2x24x8x1xf32, #tpu.memory_space<vmem>>, vector<1x1x8x1xf32>
    %351 = vector.shape_cast %350 : vector<1x1x8x1xf32> to vector<8x1xf32>
    %352 = vector.shape_cast %351 : vector<8x1xf32> to vector<1x8x1xf32>
    %353 = vector.extract_strided_slice %245 {offsets = [0, 4, 0], sizes = [2, 1, 256], strides = [1, 1, 1]} : vector<2x8x256xf32> to vector<2x1x256xf32>
    %354 = vector.broadcast %352 : vector<1x8x1xf32> to vector<2x8x256xf32>
    %355 = vector.broadcast %353 : vector<2x1x256xf32> to vector<2x8x256xf32>
    %356 = arith.mulf %354, %355 : vector<2x8x256xf32>
    %357 = arith.addf %349, %356 : vector<2x8x256xf32>
    %c1_147 = arith.constant 1 : index
    %c13_148 = arith.constant 13 : index
    %c0_149 = arith.constant 0 : index
    %c0_150 = arith.constant 0 : index
    %358 = vector.load %arg1[%c1_147, %c13_148, %c0_149, %c0_150] : memref<2x24x8x1xf32, #tpu.memory_space<vmem>>, vector<1x1x8x1xf32>
    %359 = vector.shape_cast %358 : vector<1x1x8x1xf32> to vector<8x1xf32>
    %360 = vector.shape_cast %359 : vector<8x1xf32> to vector<1x8x1xf32>
    %361 = vector.extract_strided_slice %245 {offsets = [0, 5, 0], sizes = [2, 1, 256], strides = [1, 1, 1]} : vector<2x8x256xf32> to vector<2x1x256xf32>
    %362 = vector.broadcast %360 : vector<1x8x1xf32> to vector<2x8x256xf32>
    %363 = vector.broadcast %361 : vector<2x1x256xf32> to vector<2x8x256xf32>
    %364 = arith.mulf %362, %363 : vector<2x8x256xf32>
    %365 = arith.addf %357, %364 : vector<2x8x256xf32>
    %c1_151 = arith.constant 1 : index
    %c14_152 = arith.constant 14 : index
    %c0_153 = arith.constant 0 : index
    %c0_154 = arith.constant 0 : index
    %366 = vector.load %arg1[%c1_151, %c14_152, %c0_153, %c0_154] : memref<2x24x8x1xf32, #tpu.memory_space<vmem>>, vector<1x1x8x1xf32>
    %367 = vector.shape_cast %366 : vector<1x1x8x1xf32> to vector<8x1xf32>
    %368 = vector.shape_cast %367 : vector<8x1xf32> to vector<1x8x1xf32>
    %369 = vector.extract_strided_slice %245 {offsets = [0, 6, 0], sizes = [2, 1, 256], strides = [1, 1, 1]} : vector<2x8x256xf32> to vector<2x1x256xf32>
    %370 = vector.broadcast %368 : vector<1x8x1xf32> to vector<2x8x256xf32>
    %371 = vector.broadcast %369 : vector<2x1x256xf32> to vector<2x8x256xf32>
    %372 = arith.mulf %370, %371 : vector<2x8x256xf32>
    %373 = arith.addf %365, %372 : vector<2x8x256xf32>
    %c1_155 = arith.constant 1 : index
    %c15_156 = arith.constant 15 : index
    %c0_157 = arith.constant 0 : index
    %c0_158 = arith.constant 0 : index
    %374 = vector.load %arg1[%c1_155, %c15_156, %c0_157, %c0_158] : memref<2x24x8x1xf32, #tpu.memory_space<vmem>>, vector<1x1x8x1xf32>
    %375 = vector.shape_cast %374 : vector<1x1x8x1xf32> to vector<8x1xf32>
    %376 = vector.shape_cast %375 : vector<8x1xf32> to vector<1x8x1xf32>
    %377 = vector.extract_strided_slice %245 {offsets = [0, 7, 0], sizes = [2, 1, 256], strides = [1, 1, 1]} : vector<2x8x256xf32> to vector<2x1x256xf32>
    %378 = vector.broadcast %376 : vector<1x8x1xf32> to vector<2x8x256xf32>
    %379 = vector.broadcast %377 : vector<2x1x256xf32> to vector<2x8x256xf32>
    %380 = arith.mulf %378, %379 : vector<2x8x256xf32>
    %381 = arith.addf %373, %380 : vector<2x8x256xf32>
    %c224_i32_159 = arith.constant 224 : i32
    %382 = tpu.dynamic_rotate %245 by %c224_i32_159 dim 2 : vector<2x8x256xf32>, i32 -> vector<2x8x256xf32>
    %383 = vector.broadcast %15 : vector<1x1x256xf32> to vector<2x8x256xf32>
    %384 = arith.mulf %382, %383 : vector<2x8x256xf32>
    %c1_160 = arith.constant 1 : index
    %c16_161 = arith.constant 16 : index
    %c0_162 = arith.constant 0 : index
    %c0_163 = arith.constant 0 : index
    %385 = vector.load %arg1[%c1_160, %c16_161, %c0_162, %c0_163] : memref<2x24x8x1xf32, #tpu.memory_space<vmem>>, vector<1x1x8x1xf32>
    %386 = vector.shape_cast %385 : vector<1x1x8x1xf32> to vector<8x1xf32>
    %387 = vector.shape_cast %386 : vector<8x1xf32> to vector<1x8x1xf32>
    %388 = vector.extract_strided_slice %384 {offsets = [0, 0, 0], sizes = [2, 1, 256], strides = [1, 1, 1]} : vector<2x8x256xf32> to vector<2x1x256xf32>
    %389 = vector.broadcast %387 : vector<1x8x1xf32> to vector<2x8x256xf32>
    %390 = vector.broadcast %388 : vector<2x1x256xf32> to vector<2x8x256xf32>
    %391 = arith.mulf %389, %390 : vector<2x8x256xf32>
    %392 = arith.addf %381, %391 : vector<2x8x256xf32>
    %c1_164 = arith.constant 1 : index
    %c17_165 = arith.constant 17 : index
    %c0_166 = arith.constant 0 : index
    %c0_167 = arith.constant 0 : index
    %393 = vector.load %arg1[%c1_164, %c17_165, %c0_166, %c0_167] : memref<2x24x8x1xf32, #tpu.memory_space<vmem>>, vector<1x1x8x1xf32>
    %394 = vector.shape_cast %393 : vector<1x1x8x1xf32> to vector<8x1xf32>
    %395 = vector.shape_cast %394 : vector<8x1xf32> to vector<1x8x1xf32>
    %396 = vector.extract_strided_slice %384 {offsets = [0, 1, 0], sizes = [2, 1, 256], strides = [1, 1, 1]} : vector<2x8x256xf32> to vector<2x1x256xf32>
    %397 = vector.broadcast %395 : vector<1x8x1xf32> to vector<2x8x256xf32>
    %398 = vector.broadcast %396 : vector<2x1x256xf32> to vector<2x8x256xf32>
    %399 = arith.mulf %397, %398 : vector<2x8x256xf32>
    %400 = arith.addf %392, %399 : vector<2x8x256xf32>
    %c1_168 = arith.constant 1 : index
    %c18_169 = arith.constant 18 : index
    %c0_170 = arith.constant 0 : index
    %c0_171 = arith.constant 0 : index
    %401 = vector.load %arg1[%c1_168, %c18_169, %c0_170, %c0_171] : memref<2x24x8x1xf32, #tpu.memory_space<vmem>>, vector<1x1x8x1xf32>
    %402 = vector.shape_cast %401 : vector<1x1x8x1xf32> to vector<8x1xf32>
    %403 = vector.shape_cast %402 : vector<8x1xf32> to vector<1x8x1xf32>
    %404 = vector.extract_strided_slice %384 {offsets = [0, 2, 0], sizes = [2, 1, 256], strides = [1, 1, 1]} : vector<2x8x256xf32> to vector<2x1x256xf32>
    %405 = vector.broadcast %403 : vector<1x8x1xf32> to vector<2x8x256xf32>
    %406 = vector.broadcast %404 : vector<2x1x256xf32> to vector<2x8x256xf32>
    %407 = arith.mulf %405, %406 : vector<2x8x256xf32>
    %408 = arith.addf %400, %407 : vector<2x8x256xf32>
    %c1_172 = arith.constant 1 : index
    %c19_173 = arith.constant 19 : index
    %c0_174 = arith.constant 0 : index
    %c0_175 = arith.constant 0 : index
    %409 = vector.load %arg1[%c1_172, %c19_173, %c0_174, %c0_175] : memref<2x24x8x1xf32, #tpu.memory_space<vmem>>, vector<1x1x8x1xf32>
    %410 = vector.shape_cast %409 : vector<1x1x8x1xf32> to vector<8x1xf32>
    %411 = vector.shape_cast %410 : vector<8x1xf32> to vector<1x8x1xf32>
    %412 = vector.extract_strided_slice %384 {offsets = [0, 3, 0], sizes = [2, 1, 256], strides = [1, 1, 1]} : vector<2x8x256xf32> to vector<2x1x256xf32>
    %413 = vector.broadcast %411 : vector<1x8x1xf32> to vector<2x8x256xf32>
    %414 = vector.broadcast %412 : vector<2x1x256xf32> to vector<2x8x256xf32>
    %415 = arith.mulf %413, %414 : vector<2x8x256xf32>
    %416 = arith.addf %408, %415 : vector<2x8x256xf32>
    %c1_176 = arith.constant 1 : index
    %c20_177 = arith.constant 20 : index
    %c0_178 = arith.constant 0 : index
    %c0_179 = arith.constant 0 : index
    %417 = vector.load %arg1[%c1_176, %c20_177, %c0_178, %c0_179] : memref<2x24x8x1xf32, #tpu.memory_space<vmem>>, vector<1x1x8x1xf32>
    %418 = vector.shape_cast %417 : vector<1x1x8x1xf32> to vector<8x1xf32>
    %419 = vector.shape_cast %418 : vector<8x1xf32> to vector<1x8x1xf32>
    %420 = vector.extract_strided_slice %384 {offsets = [0, 4, 0], sizes = [2, 1, 256], strides = [1, 1, 1]} : vector<2x8x256xf32> to vector<2x1x256xf32>
    %421 = vector.broadcast %419 : vector<1x8x1xf32> to vector<2x8x256xf32>
    %422 = vector.broadcast %420 : vector<2x1x256xf32> to vector<2x8x256xf32>
    %423 = arith.mulf %421, %422 : vector<2x8x256xf32>
    %424 = arith.addf %416, %423 : vector<2x8x256xf32>
    %c1_180 = arith.constant 1 : index
    %c21_181 = arith.constant 21 : index
    %c0_182 = arith.constant 0 : index
    %c0_183 = arith.constant 0 : index
    %425 = vector.load %arg1[%c1_180, %c21_181, %c0_182, %c0_183] : memref<2x24x8x1xf32, #tpu.memory_space<vmem>>, vector<1x1x8x1xf32>
    %426 = vector.shape_cast %425 : vector<1x1x8x1xf32> to vector<8x1xf32>
    %427 = vector.shape_cast %426 : vector<8x1xf32> to vector<1x8x1xf32>
    %428 = vector.extract_strided_slice %384 {offsets = [0, 5, 0], sizes = [2, 1, 256], strides = [1, 1, 1]} : vector<2x8x256xf32> to vector<2x1x256xf32>
    %429 = vector.broadcast %427 : vector<1x8x1xf32> to vector<2x8x256xf32>
    %430 = vector.broadcast %428 : vector<2x1x256xf32> to vector<2x8x256xf32>
    %431 = arith.mulf %429, %430 : vector<2x8x256xf32>
    %432 = arith.addf %424, %431 : vector<2x8x256xf32>
    %c1_184 = arith.constant 1 : index
    %c22_185 = arith.constant 22 : index
    %c0_186 = arith.constant 0 : index
    %c0_187 = arith.constant 0 : index
    %433 = vector.load %arg1[%c1_184, %c22_185, %c0_186, %c0_187] : memref<2x24x8x1xf32, #tpu.memory_space<vmem>>, vector<1x1x8x1xf32>
    %434 = vector.shape_cast %433 : vector<1x1x8x1xf32> to vector<8x1xf32>
    %435 = vector.shape_cast %434 : vector<8x1xf32> to vector<1x8x1xf32>
    %436 = vector.extract_strided_slice %384 {offsets = [0, 6, 0], sizes = [2, 1, 256], strides = [1, 1, 1]} : vector<2x8x256xf32> to vector<2x1x256xf32>
    %437 = vector.broadcast %435 : vector<1x8x1xf32> to vector<2x8x256xf32>
    %438 = vector.broadcast %436 : vector<2x1x256xf32> to vector<2x8x256xf32>
    %439 = arith.mulf %437, %438 : vector<2x8x256xf32>
    %440 = arith.addf %432, %439 : vector<2x8x256xf32>
    %c1_188 = arith.constant 1 : index
    %c23_189 = arith.constant 23 : index
    %c0_190 = arith.constant 0 : index
    %c0_191 = arith.constant 0 : index
    %441 = vector.load %arg1[%c1_188, %c23_189, %c0_190, %c0_191] : memref<2x24x8x1xf32, #tpu.memory_space<vmem>>, vector<1x1x8x1xf32>
    %442 = vector.shape_cast %441 : vector<1x1x8x1xf32> to vector<8x1xf32>
    %443 = vector.shape_cast %442 : vector<8x1xf32> to vector<1x8x1xf32>
    %444 = vector.extract_strided_slice %384 {offsets = [0, 7, 0], sizes = [2, 1, 256], strides = [1, 1, 1]} : vector<2x8x256xf32> to vector<2x1x256xf32>
    %445 = vector.broadcast %443 : vector<1x8x1xf32> to vector<2x8x256xf32>
    %446 = vector.broadcast %444 : vector<2x1x256xf32> to vector<2x8x256xf32>
    %447 = arith.mulf %445, %446 : vector<2x8x256xf32>
    %448 = arith.addf %440, %447 : vector<2x8x256xf32>
    %cst_192 = arith.constant 0.000000e+00 : f32
    %449 = vector.broadcast %cst_192 : f32 to vector<2x8x256xf32>
    %450 = arith.maximumf %448, %449 : vector<2x8x256xf32>
    %c4_193 = arith.constant 4 : index
    %c0_194 = arith.constant 0 : index
    %c0_195 = arith.constant 0 : index
    %451 = vector.load %arg2[%c4_193, %c0_194, %c0_195] : memref<6x8x1xf32, #tpu.memory_space<vmem>>, vector<1x8x1xf32>
    %452 = vector.shape_cast %451 : vector<1x8x1xf32> to vector<8x1xf32>
    %453 = vector.shape_cast %452 : vector<8x1xf32> to vector<1x8x1xf32>
    %c5_196 = arith.constant 5 : index
    %c0_197 = arith.constant 0 : index
    %c0_198 = arith.constant 0 : index
    %454 = vector.load %arg2[%c5_196, %c0_197, %c0_198] : memref<6x8x1xf32, #tpu.memory_space<vmem>>, vector<1x8x1xf32>
    %455 = vector.shape_cast %454 : vector<1x8x1xf32> to vector<8x1xf32>
    %456 = vector.shape_cast %455 : vector<8x1xf32> to vector<1x8x1xf32>
    %cst_199 = arith.constant dense<0.000000e+00> : vector<8xf32>
    %457 = vector.multi_reduction <add>, %450, %cst_199 [0, 2] : vector<2x8x256xf32> to vector<8xf32>
    %458 = vector.shape_cast %457 : vector<8xf32> to vector<1x8x1xf32>
    %cst_200 = arith.constant 0.001953125 : f32
    %459 = vector.broadcast %cst_200 : f32 to vector<1x8x1xf32>
    %460 = arith.mulf %458, %459 : vector<1x8x1xf32>
    %461 = vector.broadcast %460 : vector<1x8x1xf32> to vector<2x8x256xf32>
    %462 = arith.subf %450, %461 : vector<2x8x256xf32>
    %463 = arith.mulf %462, %462 : vector<2x8x256xf32>
    %cst_201 = arith.constant dense<0.000000e+00> : vector<8xf32>
    %464 = vector.multi_reduction <add>, %463, %cst_201 [0, 2] : vector<2x8x256xf32> to vector<8xf32>
    %465 = vector.shape_cast %464 : vector<8xf32> to vector<1x8x1xf32>
    %cst_202 = arith.constant 0.001953125 : f32
    %466 = vector.broadcast %cst_202 : f32 to vector<1x8x1xf32>
    %467 = arith.mulf %465, %466 : vector<1x8x1xf32>
    %cst_203 = arith.constant 9.99999974E-6 : f32
    %468 = vector.broadcast %cst_203 : f32 to vector<1x8x1xf32>
    %469 = arith.addf %467, %468 : vector<1x8x1xf32>
    %470 = math.rsqrt %469 : vector<1x8x1xf32>
    %471 = arith.mulf %453, %470 : vector<1x8x1xf32>
    %472 = vector.broadcast %471 : vector<1x8x1xf32> to vector<2x8x256xf32>
    %473 = arith.mulf %462, %472 : vector<2x8x256xf32>
    %474 = vector.broadcast %456 : vector<1x8x1xf32> to vector<2x8x256xf32>
    %475 = arith.addf %473, %474 : vector<2x8x256xf32>
    %c0_204 = arith.constant 0 : index
    %c0_205 = arith.constant 0 : index
    %c0_206 = arith.constant 0 : index
    %476 = vector.load %arg3[%c0_204, %c0_205, %c0_206] : memref<2x8x256xf32, #tpu.memory_space<vmem>>, vector<2x8x256xf32>
    tpu.vector_store %arg3[%c0_204, %c0_205, %c0_206], %475 {strides = array<i32>} : memref<2x8x256xf32, #tpu.memory_space<vmem>>, vector<2x8x256xf32>,
    return
  }
}

</mosaic_0001>

<llo_original>
// kernel: tpu_custom_call.1
$region0: #{tpu_custom_call.1}
  #allocation0 [shape = 'u32[]', space=smem, size = 0x4, offset = 0x4, fixed_abs, tag = 'smem constant byte address 0x4 - core index']
  #allocation1 [shape = 'u32[72,128]{1,0:T(1,128)}', space=vmem, size = 0x9000, scoped, tag = 'internal scratch']
  %s0 = inlined_call_operand.vmem [shape: f32[2,8,256], index: 0, kind: input, shape index: {}]
  %s1 = inlined_call_operand.vmem [shape: f32[2,24,8,1], index: 1, kind: input, shape index: {}]
  %s2 = inlined_call_operand.vmem [shape: f32[6,8,1], index: 2, kind: input, shape index: {}]
  %s3 = inlined_call_operand.hbm [shape: f32[2,8,256], index: 3, kind: output, shape index: {}]
  %s4 = sld [smem:[#allocation0]]
  $region22: #{tpu_custom_call.1} parent=0
    _
  %s6 = ssub.s32 1, %s4
  %s7 = scalar_select 0, %s6, %s4
  $region1: #{tpu_custom_call.1} parent=0
    #allocation2 [shape = 'u8[16384]{0}', space=vmem, size = 0x4000, scoped, tag = 'output window, operand 0, single buffered']
    #allocation3 [shape = 's32[1]{0}', space=sflag, size = 0x4, scoped, tag = 'scoped memory for tpu_custom_call.1']
    %8 = vsyncpa [#allocation3], 0
    // Predicated region
    $region2: #{tpu_custom_call.1} parent=1 // pred_check
      _
    $region3: #{tpu_custom_call.1} parent=1 // pred_check_branch
      %10 = sbr.rel (0) target = $region5
    $region4: #{tpu_custom_call.1} parent=1 // pred_region
      _
    $region5: #{tpu_custom_call.1} parent=1 // pred_fallthru
      _
    // Predicated region
    $region6: #{tpu_custom_call.1} parent=1 // pred_check
      _
    $region7: #{tpu_custom_call.1} parent=1 // pred_check_branch
      %12 = sbr.rel (0) target = $region9
    $region8: #{tpu_custom_call.1} parent=1 // pred_region
      _
    $region9: #{tpu_custom_call.1} parent=1 // pred_fallthru
      _
    // Predicated region
    $region10: #{tpu_custom_call.1} parent=1 // pred_check
      _
    $region11: #{tpu_custom_call.1} parent=1 // pred_check_branch
      %14 = sbr.rel (0) target = $region13
    $region12: #{tpu_custom_call.1} parent=1 // pred_region
      _
    $region13: #{tpu_custom_call.1} parent=1 // pred_fallthru
      _
    %v15 = vld [vmem:[%s0] sm:$0xff]
    %v16 = vld [vmem:[%s0 + $0x8] sm:$0xff]
    %v17 = vld [vmem:[%s0 + $0x10] sm:$0xff]
    %v18 = vld [vmem:[%s0 + $0x18] sm:$0xff]
    %v19 = vlaneseq
    %v20 = vand.u32 %v19, 127
    %v21 = vadd.s32 %v20, 128
    %vm22 = vcmp.ge.s32.totalorder %v20, 32
    %vm23 = vcmp.ge.s32.totalorder %v21, 32
    %vm24 = vcmp.lt.s32.totalorder %v20, 256
    %vm25 = vcmp.lt.s32.totalorder %v21, 256
    %vm26 = vmand %vm22, %vm24
    %vm27 = vmand %vm23, %vm25
    %v28 = vsel %vm26, 1, 0
    %v29 = vsel %vm27, 1, 0
    %v30 = vcvt.s32.f32 %v28
    %v31 = vcvt.s32.f32 %v29
    %vm32 = vcmp.ge.s32.totalorder %v20, 0
    %vm33 = vcmp.ge.s32.totalorder %v21, 0
    %vm34 = vcmp.lt.s32.totalorder %v20, 224
    %vm35 = vcmp.lt.s32.totalorder %v21, 224
    %vm36 = vmand %vm32, %vm34
    %vm37 = vmand %vm33, %vm35
    %v38 = vsel %vm36, 1, 0
    %v39 = vsel %vm37, 1, 0
    %v40 = vcvt.s32.f32 %v38
    %v41 = vcvt.s32.f32 %v39
    %v42 = vld [vmem:[%s2] sm:$0xff]
    %44 = vset.pattern.permute.xlu0 0
    %45 = vperm.xlu0 %44, %v42
    %v46 = vpop.permute.xlu0 %45
    %48 = vrot.lane.b32.xlu0 %v15, 32
    %v49 = vpop.permute.xlu0 %48
    %50 = vrot.lane.b32.xlu0 %v17, 32
    %v51 = vpop.permute.xlu0 %50
    %52 = vrot.lane.b32.xlu0 %v16, 32
    %v53 = vpop.permute.xlu0 %52
    %54 = vrot.lane.b32.xlu0 %v18, 32
    %v55 = vpop.permute.xlu0 %54
    %vm56 = vcmp.lt.s32.totalorder %v20, 32
    %v57 = vsel %vm56, %v49, %v53
    %v58 = vsel %vm56, %v51, %v55
    %v59 = vsel %vm56, %v53, %v49
    %v60 = vsel %vm56, %v55, %v51
    %v61 = vmul.f32 %v59, %v30
    %v62 = vmul.f32 %v57, %v31
    %v63 = vmul.f32 %v60, %v30
    %v64 = vmul.f32 %v58, %v31
    %v65 = vld [vmem:[%s1] sm:$0xff]
    %67 = vset.pattern.permute.xlu0 0
    %68 = vperm.xlu0 %67, %v65
    %v69 = vpop.permute.xlu0 %68
    %v71 = vperm.slane %v61, 0
    %v72 = vperm.slane %v62, 0
    %v73 = vperm.slane %v63, 0
    %v74 = vperm.slane %v64, 0
    %v75 = vmul.f32 %v69, %v71
    %v76 = vmul.f32 %v69, %v72
    %v77 = vmul.f32 %v69, %v73
    %v78 = vmul.f32 %v69, %v74
    %v79 = vadd.f32 %v46, %v75
    %v80 = vadd.f32 %v46, %v76
    %v81 = vadd.f32 %v46, %v77
    %v82 = vadd.f32 %v46, %v78
    %s83 = scalar_lea.vmem %s1, 8
    %v84 = vld [vmem:[%s83] sm:$0xff]
    %86 = vset.pattern.permute.xlu0 0
    %87 = vperm.xlu0 %86, %v84
    %v88 = vpop.permute.xlu0 %87
    %v90 = vperm.slane %v61, 1
    %v91 = vperm.slane %v62, 1
    %v92 = vperm.slane %v63, 1
    %v93 = vperm.slane %v64, 1
    %v94 = vmul.f32 %v88, %v90
    %v95 = vmul.f32 %v88, %v91
    %v96 = vmul.f32 %v88, %v92
    %v97 = vmul.f32 %v88, %v93
    %v98 = vadd.f32 %v79, %v94
    %v99 = vadd.f32 %v80, %v95
    %v100 = vadd.f32 %v81, %v96
    %v101 = vadd.f32 %v82, %v97
    %s102 = scalar_lea.vmem %s1, 16
    %v103 = vld [vmem:[%s102] sm:$0xff]
    %105 = vset.pattern.permute.xlu0 0
    %106 = vperm.xlu0 %105, %v103
    %v107 = vpop.permute.xlu0 %106
    %v109 = vperm.slane %v61, 2
    %v110 = vperm.slane %v62, 2
    %v111 = vperm.slane %v63, 2
    %v112 = vperm.slane %v64, 2
    %v113 = vmul.f32 %v107, %v109
    %v114 = vmul.f32 %v107, %v110
    %v115 = vmul.f32 %v107, %v111
    %v116 = vmul.f32 %v107, %v112
    %v117 = vadd.f32 %v98, %v113
    %v118 = vadd.f32 %v99, %v114
    %v119 = vadd.f32 %v100, %v115
    %v120 = vadd.f32 %v101, %v116
    %s121 = scalar_lea.vmem %s1, 24
    %v122 = vld [vmem:[%s121] sm:$0xff]
    %124 = vset.pattern.permute.xlu0 0
    %125 = vperm.xlu0 %124, %v122
    %v126 = vpop.permute.xlu0 %125
    %v128 = vperm.slane %v61, 3
    %v129 = vperm.slane %v62, 3
    %v130 = vperm.slane %v63, 3
    %v131 = vperm.slane %v64, 3
    %v132 = vmul.f32 %v126, %v128
    %v133 = vmul.f32 %v126, %v129
    %v134 = vmul.f32 %v126, %v130
    %v135 = vmul.f32 %v126, %v131
    %v136 = vadd.f32 %v117, %v132
    %v137 = vadd.f32 %v118, %v133
    %v138 = vadd.f32 %v119, %v134
    %v139 = vadd.f32 %v120, %v135
    %s140 = scalar_lea.vmem %s1, 32
    %v141 = vld [vmem:[%s140] sm:$0xff]
    %143 = vset.pattern.permute.xlu0 0
    %144 = vperm.xlu0 %143, %v141
    %v145 = vpop.permute.xlu0 %144
    %v147 = vperm.slane %v61, 4
    %v148 = vperm.slane %v62, 4
    %v149 = vperm.slane %v63, 4
    %v150 = vperm.slane %v64, 4
    %v151 = vmul.f32 %v145, %v147
    %v152 = vmul.f32 %v145, %v148
    %v153 = vmul.f32 %v145, %v149
    %v154 = vmul.f32 %v145, %v150
    %v155 = vadd.f32 %v136, %v151
    %v156 = vadd.f32 %v137, %v152
    %v157 = vadd.f32 %v138, %v153
    %v158 = vadd.f32 %v139, %v154
    %s159 = scalar_lea.vmem %s1, 40
    %v160 = vld [vmem:[%s159] sm:$0xff]
    %162 = vset.pattern.permute.xlu0 0
    %163 = vperm.xlu0 %162, %v160
    %v164 = vpop.permute.xlu0 %163
    %v166 = vperm.slane %v61, 5
    %v167 = vperm.slane %v62, 5
    %v168 = vperm.slane %v63, 5
    %v169 = vperm.slane %v64, 5
    %v170 = vmul.f32 %v164, %v166
    %v171 = vmul.f32 %v164, %v167
    %v172 = vmul.f32 %v164, %v168
    %v173 = vmul.f32 %v164, %v169
    %v174 = vadd.f32 %v155, %v170
    %v175 = vadd.f32 %v156, %v171
    %v176 = vadd.f32 %v157, %v172
    %v177 = vadd.f32 %v158, %v173
    %s178 = scalar_lea.vmem %s1, 48
    %v179 = vld [vmem:[%s178] sm:$0xff]
    %181 = vset.pattern.permute.xlu0 0
    %182 = vperm.xlu0 %181, %v179
    %v183 = vpop.permute.xlu0 %182
    %v185 = vperm.slane %v61, 6
    %v186 = vperm.slane %v62, 6
    %v187 = vperm.slane %v63, 6
    %v188 = vperm.slane %v64, 6
    %v189 = vmul.f32 %v183, %v185
    %v190 = vmul.f32 %v183, %v186
    %v191 = vmul.f32 %v183, %v187
    %v192 = vmul.f32 %v183, %v188
    %v193 = vadd.f32 %v174, %v189
    %v194 = vadd.f32 %v175, %v190
    %v195 = vadd.f32 %v176, %v191
    %v196 = vadd.f32 %v177, %v192
    %s197 = scalar_lea.vmem %s1, 56
    %v198 = vld [vmem:[%s197] sm:$0xff]
    %200 = vset.pattern.permute.xlu0 0
    %201 = vperm.xlu0 %200, %v198
    %v202 = vpop.permute.xlu0 %201
    %v204 = vperm.slane %v61, 7
    %v205 = vperm.slane %v62, 7
    %v206 = vperm.slane %v63, 7
    %v207 = vperm.slane %v64, 7
    %v208 = vmul.f32 %v202, %v204
    %v209 = vmul.f32 %v202, %v205
    %v210 = vmul.f32 %v202, %v206
    %v211 = vmul.f32 %v202, %v207
    %v212 = vadd.f32 %v193, %v208
    %v213 = vadd.f32 %v194, %v209
    %v214 = vadd.f32 %v195, %v210
    %v215 = vadd.f32 %v196, %v211
    %s216 = scalar_lea.vmem %s1, 64
    %v217 = vld [vmem:[%s216] sm:$0xff]
    %219 = vset.pattern.permute.xlu0 0
    %220 = vperm.xlu0 %219, %v217
    %v221 = vpop.permute.xlu0 %220
    %v223 = vperm.slane %v15, 0
    %v224 = vperm.slane %v16, 0
    %v225 = vperm.slane %v17, 0
    %v226 = vperm.slane %v18, 0
    %v227 = vmul.f32 %v221, %v223
    %v228 = vmul.f32 %v221, %v224
    %v229 = vmul.f32 %v221, %v225
    %v230 = vmul.f32 %v221, %v226
    %v231 = vadd.f32 %v212, %v227
    %v232 = vadd.f32 %v213, %v228
    %v233 = vadd.f32 %v214, %v229
    %v234 = vadd.f32 %v215, %v230
    %s235 = scalar_lea.vmem %s1, 72
    %v236 = vld [vmem:[%s235] sm:$0xff]
    %238 = vset.pattern.permute.xlu0 0
    %239 = vperm.xlu0 %238, %v236
    %v240 = vpop.permute.xlu0 %239
    %v242 = vperm.slane %v15, 1
    %v243 = vperm.slane %v16, 1
    %v244 = vperm.slane %v17, 1
    %v245 = vperm.slane %v18, 1
    %v246 = vmul.f32 %v240, %v242
    %v247 = vmul.f32 %v240, %v243
    %v248 = vmul.f32 %v240, %v244
    %v249 = vmul.f32 %v240, %v245
    %v250 = vadd.f32 %v231, %v246
    %v251 = vadd.f32 %v232, %v247
    %v252 = vadd.f32 %v233, %v248
    %v253 = vadd.f32 %v234, %v249
    %s254 = scalar_lea.vmem %s1, 80
    %v255 = vld [vmem:[%s254] sm:$0xff]
    %257 = vset.pattern.permute.xlu0 0
    %258 = vperm.xlu0 %257, %v255
    %v259 = vpop.permute.xlu0 %258
    %v261 = vperm.slane %v15, 2
    %v262 = vperm.slane %v16, 2
    %v263 = vperm.slane %v17, 2
    %v264 = vperm.slane %v18, 2
    %v265 = vmul.f32 %v259, %v261
    %v266 = vmul.f32 %v259, %v262
    %v267 = vmul.f32 %v259, %v263
    %v268 = vmul.f32 %v259, %v264
    %v269 = vadd.f32 %v250, %v265
    %v270 = vadd.f32 %v251, %v266
    %v271 = vadd.f32 %v252, %v267
    %v272 = vadd.f32 %v253, %v268
    %s273 = scalar_lea.vmem %s1, 88
    %v274 = vld [vmem:[%s273] sm:$0xff]
    %276 = vset.pattern.permute.xlu0 0
    %277 = vperm.xlu0 %276, %v274
    %v278 = vpop.permute.xlu0 %277
    %v280 = vperm.slane %v15, 3
    %v281 = vperm.slane %v16, 3
    %v282 = vperm.slane %v17, 3
    %v283 = vperm.slane %v18, 3
    %v284 = vmul.f32 %v278, %v280
    %v285 = vmul.f32 %v278, %v281
    %v286 = vmul.f32 %v278, %v282
    %v287 = vmul.f32 %v278, %v283
    %v288 = vadd.f32 %v269, %v284
    %v289 = vadd.f32 %v270, %v285
    %v290 = vadd.f32 %v271, %v286
    %v291 = vadd.f32 %v272, %v287
    %s292 = scalar_lea.vmem %s1, 96
    %v293 = vld [vmem:[%s292] sm:$0xff]
    %295 = vset.pattern.permute.xlu0 0
    %296 = vperm.xlu0 %295, %v293
    %v297 = vpop.permute.xlu0 %296
    %v299 = vperm.slane %v15, 4
    %v300 = vperm.slane %v16, 4
    %v301 = vperm.slane %v17, 4
    %v302 = vperm.slane %v18, 4
    %v303 = vmul.f32 %v297, %v299
    %v304 = vmul.f32 %v297, %v300
    %v305 = vmul.f32 %v297, %v301
    %v306 = vmul.f32 %v297, %v302
    %v307 = vadd.f32 %v288, %v303
    %v308 = vadd.f32 %v289, %v304
    %v309 = vadd.f32 %v290, %v305
    %v310 = vadd.f32 %v291, %v306
    %s311 = scalar_lea.vmem %s1, 104
    %v312 = vld [vmem:[%s311] sm:$0xff]
    %314 = vset.pattern.permute.xlu0 0
    %315 = vperm.xlu0 %314, %v312
    %v316 = vpop.permute.xlu0 %315
    %v318 = vperm.slane %v15, 5
    %v319 = vperm.slane %v16, 5
    %v320 = vperm.slane %v17, 5
    %v321 = vperm.slane %v18, 5
    %v322 = vmul.f32 %v316, %v318
    %v323 = vmul.f32 %v316, %v319
    %v324 = vmul.f32 %v316, %v320
    %v325 = vmul.f32 %v316, %v321
    %v326 = vadd.f32 %v307, %v322
    %v327 = vadd.f32 %v308, %v323
    %v328 = vadd.f32 %v309, %v324
    %v329 = vadd.f32 %v310, %v325
    %s330 = scalar_lea.vmem %s1, 112
    %v331 = vld [vmem:[%s330] sm:$0xff]
    %333 = vset.pattern.permute.xlu0 0
    %334 = vperm.xlu0 %333, %v331
    %v335 = vpop.permute.xlu0 %334
    %v337 = vperm.slane %v15, 6
    %v338 = vperm.slane %v16, 6
    %v339 = vperm.slane %v17, 6
    %v340 = vperm.slane %v18, 6
    %v341 = vmul.f32 %v335, %v337
    %v342 = vmul.f32 %v335, %v338
    %v343 = vmul.f32 %v335, %v339
    %v344 = vmul.f32 %v335, %v340
    %v345 = vadd.f32 %v326, %v341
    %v346 = vadd.f32 %v327, %v342
    %v347 = vadd.f32 %v328, %v343
    %v348 = vadd.f32 %v329, %v344
    %s349 = scalar_lea.vmem %s1, 120
    %v350 = vld [vmem:[%s349] sm:$0xff]
    %352 = vset.pattern.permute.xlu0 0
    %353 = vperm.xlu0 %352, %v350
    %v354 = vpop.permute.xlu0 %353
    %v356 = vperm.slane %v15, 7
    %v357 = vperm.slane %v16, 7
    %v358 = vperm.slane %v17, 7
    %v359 = vperm.slane %v18, 7
    %v360 = vmul.f32 %v354, %v356
    %v361 = vmul.f32 %v354, %v357
    %v362 = vmul.f32 %v354, %v358
    %v363 = vmul.f32 %v354, %v359
    %v364 = vadd.f32 %v345, %v360
    %v365 = vadd.f32 %v346, %v361
    %v366 = vadd.f32 %v347, %v362
    %v367 = vadd.f32 %v348, %v363
    %368 = vrot.lane.b32.xlu0 %v15, 96
    %v369 = vpop.permute.xlu0 %368
    %370 = vrot.lane.b32.xlu0 %v17, 96
    %v371 = vpop.permute.xlu0 %370
    %372 = vrot.lane.b32.xlu0 %v16, 96
    %v373 = vpop.permute.xlu0 %372
    %374 = vrot.lane.b32.xlu0 %v18, 96
    %v375 = vpop.permute.xlu0 %374
    %vm376 = vcmp.lt.s32.totalorder %v20, 96
    %v377 = vsel %vm376, %v369, %v373
    %v378 = vsel %vm376, %v371, %v375
    %v379 = vsel %vm376, %v373, %v369
    %v380 = vsel %vm376, %v375, %v371
    %v381 = vmul.f32 %v377, %v40
    %v382 = vmul.f32 %v379, %v41
    %v383 = vmul.f32 %v378, %v40
    %v384 = vmul.f32 %v380, %v41
    %s385 = scalar_lea.vmem %s1, 128
    %v386 = vld [vmem:[%s385] sm:$0xff]
    %388 = vset.pattern.permute.xlu0 0
    %389 = vperm.xlu0 %388, %v386
    %v390 = vpop.permute.xlu0 %389
    %v392 = vperm.slane %v381, 0
    %v393 = vperm.slane %v382, 0
    %v394 = vperm.slane %v383, 0
    %v395 = vperm.slane %v384, 0
    %v396 = vmul.f32 %v390, %v392
    %v397 = vmul.f32 %v390, %v393
    %v398 = vmul.f32 %v390, %v394
    %v399 = vmul.f32 %v390, %v395
    %v400 = vadd.f32 %v364, %v396
    %v401 = vadd.f32 %v365, %v397
    %v402 = vadd.f32 %v366, %v398
    %v403 = vadd.f32 %v367, %v399
    %s404 = scalar_lea.vmem %s1, 136
    %v405 = vld [vmem:[%s404] sm:$0xff]
    %407 = vset.pattern.permute.xlu0 0
    %408 = vperm.xlu0 %407, %v405
    %v409 = vpop.permute.xlu0 %408
    %v411 = vperm.slane %v381, 1
    %v412 = vperm.slane %v382, 1
    %v413 = vperm.slane %v383, 1
    %v414 = vperm.slane %v384, 1
    %v415 = vmul.f32 %v409, %v411
    %v416 = vmul.f32 %v409, %v412
    %v417 = vmul.f32 %v409, %v413
    %v418 = vmul.f32 %v409, %v414
    %v419 = vadd.f32 %v400, %v415
    %v420 = vadd.f32 %v401, %v416
    %v421 = vadd.f32 %v402, %v417
    %v422 = vadd.f32 %v403, %v418
    %s423 = scalar_lea.vmem %s1, 144
    %v424 = vld [vmem:[%s423] sm:$0xff]
    %426 = vset.pattern.permute.xlu0 0
    %427 = vperm.xlu0 %426, %v424
    %v428 = vpop.permute.xlu0 %427
    %v430 = vperm.slane %v381, 2
    %v431 = vperm.slane %v382, 2
    %v432 = vperm.slane %v383, 2
    %v433 = vperm.slane %v384, 2
    %v434 = vmul.f32 %v428, %v430
    %v435 = vmul.f32 %v428, %v431
    %v436 = vmul.f32 %v428, %v432
    %v437 = vmul.f32 %v428, %v433
    %v438 = vadd.f32 %v419, %v434
    %v439 = vadd.f32 %v420, %v435
    %v440 = vadd.f32 %v421, %v436
    %v441 = vadd.f32 %v422, %v437
    %s442 = scalar_lea.vmem %s1, 152
    %v443 = vld [vmem:[%s442] sm:$0xff]
    %445 = vset.pattern.permute.xlu0 0
    %446 = vperm.xlu0 %445, %v443
    %v447 = vpop.permute.xlu0 %446
    %v449 = vperm.slane %v381, 3
    %v450 = vperm.slane %v382, 3
    %v451 = vperm.slane %v383, 3
    %v452 = vperm.slane %v384, 3
    %v453 = vmul.f32 %v447, %v449
    %v454 = vmul.f32 %v447, %v450
    %v455 = vmul.f32 %v447, %v451
    %v456 = vmul.f32 %v447, %v452
    %v457 = vadd.f32 %v438, %v453
    %v458 = vadd.f32 %v439, %v454
    %v459 = vadd.f32 %v440, %v455
    %v460 = vadd.f32 %v441, %v456
    %s461 = scalar_lea.vmem %s1, 160
    %v462 = vld [vmem:[%s461] sm:$0xff]
    %464 = vset.pattern.permute.xlu0 0
    %465 = vperm.xlu0 %464, %v462
    %v466 = vpop.permute.xlu0 %465
    %v468 = vperm.slane %v381, 4
    %v469 = vperm.slane %v382, 4
    %v470 = vperm.slane %v383, 4
    %v471 = vperm.slane %v384, 4
    %v472 = vmul.f32 %v466, %v468
    %v473 = vmul.f32 %v466, %v469
    %v474 = vmul.f32 %v466, %v470
    %v475 = vmul.f32 %v466, %v471
    %v476 = vadd.f32 %v457, %v472
    %v477 = vadd.f32 %v458, %v473
    %v478 = vadd.f32 %v459, %v474
    %v479 = vadd.f32 %v460, %v475
    %s480 = scalar_lea.vmem %s1, 168
    %v481 = vld [vmem:[%s480] sm:$0xff]
    %483 = vset.pattern.permute.xlu0 0
    %484 = vperm.xlu0 %483, %v481
    %v485 = vpop.permute.xlu0 %484
    %v487 = vperm.slane %v381, 5
    %v488 = vperm.slane %v382, 5
    %v489 = vperm.slane %v383, 5
    %v490 = vperm.slane %v384, 5
    %v491 = vmul.f32 %v485, %v487
    %v492 = vmul.f32 %v485, %v488
    %v493 = vmul.f32 %v485, %v489
    %v494 = vmul.f32 %v485, %v490
    %v495 = vadd.f32 %v476, %v491
    %v496 = vadd.f32 %v477, %v492
    %v497 = vadd.f32 %v478, %v493
    %v498 = vadd.f32 %v479, %v494
    %s499 = scalar_lea.vmem %s1, 176
    %v500 = vld [vmem:[%s499] sm:$0xff]
    %502 = vset.pattern.permute.xlu0 0
    %503 = vperm.xlu0 %502, %v500
    %v504 = vpop.permute.xlu0 %503
    %v506 = vperm.slane %v381, 6
    %v507 = vperm.slane %v382, 6
    %v508 = vperm.slane %v383, 6
    %v509 = vperm.slane %v384, 6
    %v510 = vmul.f32 %v504, %v506
    %v511 = vmul.f32 %v504, %v507
    %v512 = vmul.f32 %v504, %v508
    %v513 = vmul.f32 %v504, %v509
    %v514 = vadd.f32 %v495, %v510
    %v515 = vadd.f32 %v496, %v511
    %v516 = vadd.f32 %v497, %v512
    %v517 = vadd.f32 %v498, %v513
    %s518 = scalar_lea.vmem %s1, 184
    %v519 = vld [vmem:[%s518] sm:$0xff]
    %521 = vset.pattern.permute.xlu0 0
    %522 = vperm.xlu0 %521, %v519
    %v523 = vpop.permute.xlu0 %522
    %v525 = vperm.slane %v381, 7
    %v526 = vperm.slane %v382, 7
    %v527 = vperm.slane %v383, 7
    %v528 = vperm.slane %v384, 7
    %v529 = vmul.f32 %v523, %v525
    %v530 = vmul.f32 %v523, %v526
    %v531 = vmul.f32 %v523, %v527
    %v532 = vmul.f32 %v523, %v528
    %v533 = vadd.f32 %v514, %v529
    %v534 = vadd.f32 %v515, %v530
    %v535 = vadd.f32 %v516, %v531
    %v536 = vadd.f32 %v517, %v532
    %v537 = vmax.f32 %v533, 0.0
    %v538 = vmax.f32 %v534, 0.0
    %v539 = vmax.f32 %v535, 0.0
    %v540 = vmax.f32 %v536, 0.0
    %s541 = scalar_lea.vmem %s2, 8
    %v542 = vld [vmem:[%s541] sm:$0xff]
    %s543 = scalar_lea.vmem %s2, 16
    %v544 = vld [vmem:[%s543] sm:$0xff]
    %v545 = vadd.f32 %v537, %v538
    %v546 = vadd.f32 %v545, %v539
    %v547 = vadd.f32 %v546, %v540
    %548 = vadd.xlane.f32.xlu0 %v547
    %v549 = vpop.xlane.xlu0 %548
    %v550 = vmul.f32 %v549, 0.001953125
    %v551 = vsub.f32 %v537, %v550
    %v552 = vsub.f32 %v538, %v550
    %v553 = vsub.f32 %v539, %v550
    %v554 = vsub.f32 %v540, %v550
    %v555 = vmul.f32 %v551, %v551
    %v556 = vmul.f32 %v552, %v552
    %v557 = vmul.f32 %v553, %v553
    %v558 = vmul.f32 %v554, %v554
    %v559 = vadd.f32 %v555, %v556
    %v560 = vadd.f32 %v559, %v557
    %v561 = vadd.f32 %v560, %v558
    %562 = vadd.xlane.f32.xlu0 %v561
    %v563 = vpop.xlane.xlu0 %562
    %v564 = vmul.f32 %v563, 0.001953125
    %v565 = vadd.f32 %v564, 1e-05
    %v566 = vrsqrt.pop %v565
    %v567 = vmul.f32 %v566, %v565
    %v568 = vmul.f32 %v567, %v566
    %v569 = vmul.f32 0.5, %v568
    %v570 = vsub.f32 1.5, %v569
    %v571 = vmul.f32 %v566, %v570
    %vm572 = vweird.f32 %v565
    %vm573 = vweird.f32 %v566
    %vm574 = vmor %vm572, %vm573
    %v575 = vsel %vm574, %v566, %v571
    %v576 = vmul.f32 %v542, %v575
    %578 = vset.pattern.permute.xlu0 0
    %579 = vperm.xlu0 %578, %v576
    %v580 = vpop.permute.xlu0 %579
    %v582 = vmul.f32 %v551, %v580
    %v583 = vmul.f32 %v552, %v580
    %v584 = vmul.f32 %v553, %v580
    %v585 = vmul.f32 %v554, %v580
    %587 = vset.pattern.permute.xlu0 0
    %588 = vperm.xlu0 %587, %v544
    %v589 = vpop.permute.xlu0 %588
    %v591 = vadd.f32 %v582, %v589
    %v592 = vadd.f32 %v583, %v589
    %v593 = vadd.f32 %v584, %v589
    %v594 = vadd.f32 %v585, %v589
    %s595 = scalar_lea.vmem %s2, 24
    %v596 = vld [vmem:[%s595] sm:$0xff]
    %598 = vset.pattern.permute.xlu0 0
    %599 = vperm.xlu0 %598, %v596
    %v600 = vpop.permute.xlu0 %599
    %v602 = vadd.f32 %v15, %v600
    %v603 = vadd.f32 %v16, %v600
    %v604 = vadd.f32 %v17, %v600
    %v605 = vadd.f32 %v18, %v600
    %606 = vrot.lane.b32.xlu0 %v591, 32
    %v607 = vpop.permute.xlu0 %606
    %608 = vrot.lane.b32.xlu0 %v593, 32
    %v609 = vpop.permute.xlu0 %608
    %610 = vrot.lane.b32.xlu0 %v592, 32
    %v611 = vpop.permute.xlu0 %610
    %612 = vrot.lane.b32.xlu0 %v594, 32
    %v613 = vpop.permute.xlu0 %612
    %v614 = vsel %vm56, %v607, %v611
    %v615 = vsel %vm56, %v609, %v613
    %v616 = vsel %vm56, %v611, %v607
    %v617 = vsel %vm56, %v613, %v609
    %v618 = vmul.f32 %v616, %v30
    %v619 = vmul.f32 %v614, %v31
    %v620 = vmul.f32 %v617, %v30
    %v621 = vmul.f32 %v615, %v31
    %s622 = scalar_lea.vmem %s1, 192
    %v623 = vld [vmem:[%s622] sm:$0xff]
    %625 = vset.pattern.permute.xlu0 0
    %626 = vperm.xlu0 %625, %v623
    %v627 = vpop.permute.xlu0 %626
    %v629 = vperm.slane %v618, 0
    %v630 = vperm.slane %v619, 0
    %v631 = vperm.slane %v620, 0
    %v632 = vperm.slane %v621, 0
    %v633 = vmul.f32 %v627, %v629
    %v634 = vmul.f32 %v627, %v630
    %v635 = vmul.f32 %v627, %v631
    %v636 = vmul.f32 %v627, %v632
    %v637 = vadd.f32 %v602, %v633
    %v638 = vadd.f32 %v603, %v634
    %v639 = vadd.f32 %v604, %v635
    %v640 = vadd.f32 %v605, %v636
    %s641 = scalar_lea.vmem %s1, 200
    %v642 = vld [vmem:[%s641] sm:$0xff]
    %644 = vset.pattern.permute.xlu0 0
    %645 = vperm.xlu0 %644, %v642
    %v646 = vpop.permute.xlu0 %645
    %v648 = vperm.slane %v618, 1
    %v649 = vperm.slane %v619, 1
    %v650 = vperm.slane %v620, 1
    %v651 = vperm.slane %v621, 1
    %v652 = vmul.f32 %v646, %v648
    %v653 = vmul.f32 %v646, %v649
    %v654 = vmul.f32 %v646, %v650
    %v655 = vmul.f32 %v646, %v651
    %v656 = vadd.f32 %v637, %v652
    %v657 = vadd.f32 %v638, %v653
    %v658 = vadd.f32 %v639, %v654
    %v659 = vadd.f32 %v640, %v655
    %s660 = scalar_lea.vmem %s1, 208
    %v661 = vld [vmem:[%s660] sm:$0xff]
    %663 = vset.pattern.permute.xlu0 0
    %664 = vperm.xlu0 %663, %v661
    %v665 = vpop.permute.xlu0 %664
    %v667 = vperm.slane %v618, 2
    %v668 = vperm.slane %v619, 2
    %v669 = vperm.slane %v620, 2
    %v670 = vperm.slane %v621, 2
    %v671 = vmul.f32 %v665, %v667
    %v672 = vmul.f32 %v665, %v668
    %v673 = vmul.f32 %v665, %v669
    %v674 = vmul.f32 %v665, %v670
    %v675 = vadd.f32 %v656, %v671
    %v676 = vadd.f32 %v657, %v672
    %v677 = vadd.f32 %v658, %v673
    %v678 = vadd.f32 %v659, %v674
    %s679 = scalar_lea.vmem %s1, 216
    %v680 = vld [vmem:[%s679] sm:$0xff]
    %682 = vset.pattern.permute.xlu0 0
    %683 = vperm.xlu0 %682, %v680
    %v684 = vpop.permute.xlu0 %683
    %v686 = vperm.slane %v618, 3
    %v687 = vperm.slane %v619, 3
    %v688 = vperm.slane %v620, 3
    %v689 = vperm.slane %v621, 3
    %v690 = vmul.f32 %v684, %v686
    %v691 = vmul.f32 %v684, %v687
    %v692 = vmul.f32 %v684, %v688
    %v693 = vmul.f32 %v684, %v689
    %v694 = vadd.f32 %v675, %v690
    %v695 = vadd.f32 %v676, %v691
    %v696 = vadd.f32 %v677, %v692
    %v697 = vadd.f32 %v678, %v693
    %s698 = scalar_lea.vmem %s1, 224
    %v699 = vld [vmem:[%s698] sm:$0xff]
    %701 = vset.pattern.permute.xlu0 0
    %702 = vperm.xlu0 %701, %v699
    %v703 = vpop.permute.xlu0 %702
    %v705 = vperm.slane %v618, 4
    %v706 = vperm.slane %v619, 4
    %v707 = vperm.slane %v620, 4
    %v708 = vperm.slane %v621, 4
    %v709 = vmul.f32 %v703, %v705
    %v710 = vmul.f32 %v703, %v706
    %v711 = vmul.f32 %v703, %v707
    %v712 = vmul.f32 %v703, %v708
    %v713 = vadd.f32 %v694, %v709
    %v714 = vadd.f32 %v695, %v710
    %v715 = vadd.f32 %v696, %v711
    %v716 = vadd.f32 %v697, %v712
    %s717 = scalar_lea.vmem %s1, 232
    %v718 = vld [vmem:[%s717] sm:$0xff]
    %720 = vset.pattern.permute.xlu0 0
    %721 = vperm.xlu0 %720, %v718
    %v722 = vpop.permute.xlu0 %721
    %v724 = vperm.slane %v618, 5
    %v725 = vperm.slane %v619, 5
    %v726 = vperm.slane %v620, 5
    %v727 = vperm.slane %v621, 5
    %v728 = vmul.f32 %v722, %v724
    %v729 = vmul.f32 %v722, %v725
    %v730 = vmul.f32 %v722, %v726
    %v731 = vmul.f32 %v722, %v727
    %v732 = vadd.f32 %v713, %v728
    %v733 = vadd.f32 %v714, %v729
    %v734 = vadd.f32 %v715, %v730
    %v735 = vadd.f32 %v716, %v731
    %s736 = scalar_lea.vmem %s1, 240
    %v737 = vld [vmem:[%s736] sm:$0xff]
    %739 = vset.pattern.permute.xlu0 0
    %740 = vperm.xlu0 %739, %v737
    %v741 = vpop.permute.xlu0 %740
    %v743 = vperm.slane %v618, 6
    %v744 = vperm.slane %v619, 6
    %v745 = vperm.slane %v620, 6
    %v746 = vperm.slane %v621, 6
    %v747 = vmul.f32 %v741, %v743
    %v748 = vmul.f32 %v741, %v744
    %v749 = vmul.f32 %v741, %v745
    %v750 = vmul.f32 %v741, %v746
    %v751 = vadd.f32 %v732, %v747
    %v752 = vadd.f32 %v733, %v748
    %v753 = vadd.f32 %v734, %v749
    %v754 = vadd.f32 %v735, %v750
    %s755 = scalar_lea.vmem %s1, 248
    %v756 = vld [vmem:[%s755] sm:$0xff]
    %758 = vset.pattern.permute.xlu0 0
    %759 = vperm.xlu0 %758, %v756
    %v760 = vpop.permute.xlu0 %759
    %v762 = vperm.slane %v618, 7
    %v763 = vperm.slane %v619, 7
    %v764 = vperm.slane %v620, 7
    %v765 = vperm.slane %v621, 7
    %v766 = vmul.f32 %v760, %v762
    %v767 = vmul.f32 %v760, %v763
    %v768 = vmul.f32 %v760, %v764
    %v769 = vmul.f32 %v760, %v765
    %v770 = vadd.f32 %v751, %v766
    %v771 = vadd.f32 %v752, %v767
    %v772 = vadd.f32 %v753, %v768
    %v773 = vadd.f32 %v754, %v769
    %s774 = scalar_lea.vmem %s1, 256
    %v775 = vld [vmem:[%s774] sm:$0xff]
    %777 = vset.pattern.permute.xlu0 0
    %778 = vperm.xlu0 %777, %v775
    %v779 = vpop.permute.xlu0 %778
    %v781 = vperm.slane %v591, 0
    %v782 = vperm.slane %v592, 0
    %v783 = vperm.slane %v593, 0
    %v784 = vperm.slane %v594, 0
    %v785 = vmul.f32 %v779, %v781
    %v786 = vmul.f32 %v779, %v782
    %v787 = vmul.f32 %v779, %v783
    %v788 = vmul.f32 %v779, %v784
    %v789 = vadd.f32 %v770, %v785
    %v790 = vadd.f32 %v771, %v786
    %v791 = vadd.f32 %v772, %v787
    %v792 = vadd.f32 %v773, %v788
    %s793 = scalar_lea.vmem %s1, 264
    %v794 = vld [vmem:[%s793] sm:$0xff]
    %796 = vset.pattern.permute.xlu0 0
    %797 = vperm.xlu0 %796, %v794
    %v798 = vpop.permute.xlu0 %797
    %v800 = vperm.slane %v591, 1
    %v801 = vperm.slane %v592, 1
    %v802 = vperm.slane %v593, 1
    %v803 = vperm.slane %v594, 1
    %v804 = vmul.f32 %v798, %v800
    %v805 = vmul.f32 %v798, %v801
    %v806 = vmul.f32 %v798, %v802
    %v807 = vmul.f32 %v798, %v803
    %v808 = vadd.f32 %v789, %v804
    %v809 = vadd.f32 %v790, %v805
    %v810 = vadd.f32 %v791, %v806
    %v811 = vadd.f32 %v792, %v807
    %s812 = scalar_lea.vmem %s1, 272
    %v813 = vld [vmem:[%s812] sm:$0xff]
    %815 = vset.pattern.permute.xlu0 0
    %816 = vperm.xlu0 %815, %v813
    %v817 = vpop.permute.xlu0 %816
    %v819 = vperm.slane %v591, 2
    %v820 = vperm.slane %v592, 2
    %v821 = vperm.slane %v593, 2
    %v822 = vperm.slane %v594, 2
    %v823 = vmul.f32 %v817, %v819
    %v824 = vmul.f32 %v817, %v820
    %v825 = vmul.f32 %v817, %v821
    %v826 = vmul.f32 %v817, %v822
    %v827 = vadd.f32 %v808, %v823
    %v828 = vadd.f32 %v809, %v824
    %v829 = vadd.f32 %v810, %v825
    %v830 = vadd.f32 %v811, %v826
    %s831 = scalar_lea.vmem %s1, 280
    %v832 = vld [vmem:[%s831] sm:$0xff]
    %834 = vset.pattern.permute.xlu0 0
    %835 = vperm.xlu0 %834, %v832
    %v836 = vpop.permute.xlu0 %835
    %v838 = vperm.slane %v591, 3
    %v839 = vperm.slane %v592, 3
    %v840 = vperm.slane %v593, 3
    %v841 = vperm.slane %v594, 3
    %v842 = vmul.f32 %v836, %v838
    %v843 = vmul.f32 %v836, %v839
    %v844 = vmul.f32 %v836, %v840
    %v845 = vmul.f32 %v836, %v841
    %v846 = vadd.f32 %v827, %v842
    %v847 = vadd.f32 %v828, %v843
    %v848 = vadd.f32 %v829, %v844
    %v849 = vadd.f32 %v830, %v845
    %s850 = scalar_lea.vmem %s1, 288
    %v851 = vld [vmem:[%s850] sm:$0xff]
    %853 = vset.pattern.permute.xlu0 0
    %854 = vperm.xlu0 %853, %v851
    %v855 = vpop.permute.xlu0 %854
    %v857 = vperm.slane %v591, 4
    %v858 = vperm.slane %v592, 4
    %v859 = vperm.slane %v593, 4
    %v860 = vperm.slane %v594, 4
    %v861 = vmul.f32 %v855, %v857
    %v862 = vmul.f32 %v855, %v858
    %v863 = vmul.f32 %v855, %v859
    %v864 = vmul.f32 %v855, %v860
    %v865 = vadd.f32 %v846, %v861
    %v866 = vadd.f32 %v847, %v862
    %v867 = vadd.f32 %v848, %v863
    %v868 = vadd.f32 %v849, %v864
    %s869 = scalar_lea.vmem %s1, 296
    %v870 = vld [vmem:[%s869] sm:$0xff]
    %872 = vset.pattern.permute.xlu0 0
    %873 = vperm.xlu0 %872, %v870
    %v874 = vpop.permute.xlu0 %873
    %v876 = vperm.slane %v591, 5
    %v877 = vperm.slane %v592, 5
    %v878 = vperm.slane %v593, 5
    %v879 = vperm.slane %v594, 5
    %v880 = vmul.f32 %v874, %v876
    %v881 = vmul.f32 %v874, %v877
    %v882 = vmul.f32 %v874, %v878
    %v883 = vmul.f32 %v874, %v879
    %v884 = vadd.f32 %v865, %v880
    %v885 = vadd.f32 %v866, %v881
    %v886 = vadd.f32 %v867, %v882
    %v887 = vadd.f32 %v868, %v883
    %s888 = scalar_lea.vmem %s1, 304
    %v889 = vld [vmem:[%s888] sm:$0xff]
    %891 = vset.pattern.permute.xlu0 0
    %892 = vperm.xlu0 %891, %v889
    %v893 = vpop.permute.xlu0 %892
    %v895 = vperm.slane %v591, 6
    %v896 = vperm.slane %v592, 6
    %v897 = vperm.slane %v593, 6
    %v898 = vperm.slane %v594, 6
    %v899 = vmul.f32 %v893, %v895
    %v900 = vmul.f32 %v893, %v896
    %v901 = vmul.f32 %v893, %v897
    %v902 = vmul.f32 %v893, %v898
    %v903 = vadd.f32 %v884, %v899
    %v904 = vadd.f32 %v885, %v900
    %v905 = vadd.f32 %v886, %v901
    %v906 = vadd.f32 %v887, %v902
    %s907 = scalar_lea.vmem %s1, 312
    %v908 = vld [vmem:[%s907] sm:$0xff]
    %910 = vset.pattern.permute.xlu0 0
    %911 = vperm.xlu0 %910, %v908
    %v912 = vpop.permute.xlu0 %911
    %v914 = vperm.slane %v591, 7
    %v915 = vperm.slane %v592, 7
    %v916 = vperm.slane %v593, 7
    %v917 = vperm.slane %v594, 7
    %v918 = vmul.f32 %v912, %v914
    %v919 = vmul.f32 %v912, %v915
    %v920 = vmul.f32 %v912, %v916
    %v921 = vmul.f32 %v912, %v917
    %v922 = vadd.f32 %v903, %v918
    %v923 = vadd.f32 %v904, %v919
    %v924 = vadd.f32 %v905, %v920
    %v925 = vadd.f32 %v906, %v921
    %926 = vrot.lane.b32.xlu0 %v591, 96
    %v927 = vpop.permute.xlu0 %926
    %928 = vrot.lane.b32.xlu0 %v593, 96
    %v929 = vpop.permute.xlu0 %928
    %930 = vrot.lane.b32.xlu0 %v592, 96
    %v931 = vpop.permute.xlu0 %930
    %932 = vrot.lane.b32.xlu0 %v594, 96
    %v933 = vpop.permute.xlu0 %932
    %v934 = vsel %vm376, %v927, %v931
    %v935 = vsel %vm376, %v929, %v933
    %v936 = vsel %vm376, %v931, %v927
    %v937 = vsel %vm376, %v933, %v929
    %v938 = vmul.f32 %v934, %v40
    %v939 = vmul.f32 %v936, %v41
    %v940 = vmul.f32 %v935, %v40
    %v941 = vmul.f32 %v937, %v41
    %s942 = scalar_lea.vmem %s1, 320
    %v943 = vld [vmem:[%s942] sm:$0xff]
    %945 = vset.pattern.permute.xlu0 0
    %946 = vperm.xlu0 %945, %v943
    %v947 = vpop.permute.xlu0 %946
    %v949 = vperm.slane %v938, 0
    %v950 = vperm.slane %v939, 0
    %v951 = vperm.slane %v940, 0
    %v952 = vperm.slane %v941, 0
    %v953 = vmul.f32 %v947, %v949
    %v954 = vmul.f32 %v947, %v950
    %v955 = vmul.f32 %v947, %v951
    %v956 = vmul.f32 %v947, %v952
    %v957 = vadd.f32 %v922, %v953
    %v958 = vadd.f32 %v923, %v954
    %v959 = vadd.f32 %v924, %v955
    %v960 = vadd.f32 %v925, %v956
    %s961 = scalar_lea.vmem %s1, 328
    %v962 = vld [vmem:[%s961] sm:$0xff]
    %964 = vset.pattern.permute.xlu0 0
    %965 = vperm.xlu0 %964, %v962
    %v966 = vpop.permute.xlu0 %965
    %v968 = vperm.slane %v938, 1
    %v969 = vperm.slane %v939, 1
    %v970 = vperm.slane %v940, 1
    %v971 = vperm.slane %v941, 1
    %v972 = vmul.f32 %v966, %v968
    %v973 = vmul.f32 %v966, %v969
    %v974 = vmul.f32 %v966, %v970
    %v975 = vmul.f32 %v966, %v971
    %v976 = vadd.f32 %v957, %v972
    %v977 = vadd.f32 %v958, %v973
    %v978 = vadd.f32 %v959, %v974
    %v979 = vadd.f32 %v960, %v975
    %s980 = scalar_lea.vmem %s1, 336
    %v981 = vld [vmem:[%s980] sm:$0xff]
    %983 = vset.pattern.permute.xlu0 0
    %984 = vperm.xlu0 %983, %v981
    %v985 = vpop.permute.xlu0 %984
    %v987 = vperm.slane %v938, 2
    %v988 = vperm.slane %v939, 2
    %v989 = vperm.slane %v940, 2
    %v990 = vperm.slane %v941, 2
    %v991 = vmul.f32 %v985, %v987
    %v992 = vmul.f32 %v985, %v988
    %v993 = vmul.f32 %v985, %v989
    %v994 = vmul.f32 %v985, %v990
    %v995 = vadd.f32 %v976, %v991
    %v996 = vadd.f32 %v977, %v992
    %v997 = vadd.f32 %v978, %v993
    %v998 = vadd.f32 %v979, %v994
    %s999 = scalar_lea.vmem %s1, 344
    %v1000 = vld [vmem:[%s999] sm:$0xff]
    %1002 = vset.pattern.permute.xlu0 0
    %1003 = vperm.xlu0 %1002, %v1000
    %v1004 = vpop.permute.xlu0 %1003
    %v1006 = vperm.slane %v938, 3
    %v1007 = vperm.slane %v939, 3
    %v1008 = vperm.slane %v940, 3
    %v1009 = vperm.slane %v941, 3
    %v1010 = vmul.f32 %v1004, %v1006
    %v1011 = vmul.f32 %v1004, %v1007
    %v1012 = vmul.f32 %v1004, %v1008
    %v1013 = vmul.f32 %v1004, %v1009
    %v1014 = vadd.f32 %v995, %v1010
    %v1015 = vadd.f32 %v996, %v1011
    %v1016 = vadd.f32 %v997, %v1012
    %v1017 = vadd.f32 %v998, %v1013
    %s1018 = scalar_lea.vmem %s1, 352
    %v1019 = vld [vmem:[%s1018] sm:$0xff]
    %1021 = vset.pattern.permute.xlu0 0
    %1022 = vperm.xlu0 %1021, %v1019
    %v1023 = vpop.permute.xlu0 %1022
    %v1025 = vperm.slane %v938, 4
    %v1026 = vperm.slane %v939, 4
    %v1027 = vperm.slane %v940, 4
    %v1028 = vperm.slane %v941, 4
    %v1029 = vmul.f32 %v1023, %v1025
    %v1030 = vmul.f32 %v1023, %v1026
    %v1031 = vmul.f32 %v1023, %v1027
    %v1032 = vmul.f32 %v1023, %v1028
    %v1033 = vadd.f32 %v1014, %v1029
    %v1034 = vadd.f32 %v1015, %v1030
    %v1035 = vadd.f32 %v1016, %v1031
    %v1036 = vadd.f32 %v1017, %v1032
    %s1037 = scalar_lea.vmem %s1, 360
    %v1038 = vld [vmem:[%s1037] sm:$0xff]
    %1040 = vset.pattern.permute.xlu0 0
    %1041 = vperm.xlu0 %1040, %v1038
    %v1042 = vpop.permute.xlu0 %1041
    %v1044 = vperm.slane %v938, 5
    %v1045 = vperm.slane %v939, 5
    %v1046 = vperm.slane %v940, 5
    %v1047 = vperm.slane %v941, 5
    %v1048 = vmul.f32 %v1042, %v1044
    %v1049 = vmul.f32 %v1042, %v1045
    %v1050 = vmul.f32 %v1042, %v1046
    %v1051 = vmul.f32 %v1042, %v1047
    %v1052 = vadd.f32 %v1033, %v1048
    %v1053 = vadd.f32 %v1034, %v1049
    %v1054 = vadd.f32 %v1035, %v1050
    %v1055 = vadd.f32 %v1036, %v1051
    %s1056 = scalar_lea.vmem %s1, 368
    %v1057 = vld [vmem:[%s1056] sm:$0xff]
    %1059 = vset.pattern.permute.xlu0 0
    %1060 = vperm.xlu0 %1059, %v1057
    %v1061 = vpop.permute.xlu0 %1060
    %v1063 = vperm.slane %v938, 6
    %v1064 = vperm.slane %v939, 6
    %v1065 = vperm.slane %v940, 6
    %v1066 = vperm.slane %v941, 6
    %v1067 = vmul.f32 %v1061, %v1063
    %v1068 = vmul.f32 %v1061, %v1064
    %v1069 = vmul.f32 %v1061, %v1065
    %v1070 = vmul.f32 %v1061, %v1066
    %v1071 = vadd.f32 %v1052, %v1067
    %v1072 = vadd.f32 %v1053, %v1068
    %v1073 = vadd.f32 %v1054, %v1069
    %v1074 = vadd.f32 %v1055, %v1070
    %s1075 = scalar_lea.vmem %s1, 376
    %v1076 = vld [vmem:[%s1075] sm:$0xff]
    %1078 = vset.pattern.permute.xlu0 0
    %1079 = vperm.xlu0 %1078, %v1076
    %v1080 = vpop.permute.xlu0 %1079
    %v1082 = vperm.slane %v938, 7
    %v1083 = vperm.slane %v939, 7
    %v1084 = vperm.slane %v940, 7
    %v1085 = vperm.slane %v941, 7
    %v1086 = vmul.f32 %v1080, %v1082
    %v1087 = vmul.f32 %v1080, %v1083
    %v1088 = vmul.f32 %v1080, %v1084
    %v1089 = vmul.f32 %v1080, %v1085
    %v1090 = vadd.f32 %v1071, %v1086
    %v1091 = vadd.f32 %v1072, %v1087
    %v1092 = vadd.f32 %v1073, %v1088
    %v1093 = vadd.f32 %v1074, %v1089
    %v1094 = vmax.f32 %v1090, 0.0
    %v1095 = vmax.f32 %v1091, 0.0
    %v1096 = vmax.f32 %v1092, 0.0
    %v1097 = vmax.f32 %v1093, 0.0
    %s1098 = scalar_lea.vmem %s2, 32
    %v1099 = vld [vmem:[%s1098] sm:$0xff]
    %s1100 = scalar_lea.vmem %s2, 40
    %v1101 = vld [vmem:[%s1100] sm:$0xff]
    %v1102 = vadd.f32 %v1094, %v1095
    %v1103 = vadd.f32 %v1102, %v1096
    %v1104 = vadd.f32 %v1103, %v1097
    %1105 = vadd.xlane.f32.xlu0 %v1104
    %v1106 = vpop.xlane.xlu0 %1105
    %v1107 = vmul.f32 %v1106, 0.001953125
    %v1108 = vsub.f32 %v1094, %v1107
    %v1109 = vsub.f32 %v1095, %v1107
    %v1110 = vsub.f32 %v1096, %v1107
    %v1111 = vsub.f32 %v1097, %v1107
    %v1112 = vmul.f32 %v1108, %v1108
    %v1113 = vmul.f32 %v1109, %v1109
    %v1114 = vmul.f32 %v1110, %v1110
    %v1115 = vmul.f32 %v1111, %v1111
    %v1116 = vadd.f32 %v1112, %v1113
    %v1117 = vadd.f32 %v1116, %v1114
    %v1118 = vadd.f32 %v1117, %v1115
    %1119 = vadd.xlane.f32.xlu0 %v1118
    %v1120 = vpop.xlane.xlu0 %1119
    %v1121 = vmul.f32 %v1120, 0.001953125
    %v1122 = vadd.f32 %v1121, 1e-05
    %v1123 = vrsqrt.pop %v1122
    %v1124 = vmul.f32 %v1123, %v1122
    %v1125 = vmul.f32 %v1124, %v1123
    %v1126 = vmul.f32 0.5, %v1125
    %v1127 = vsub.f32 1.5, %v1126
    %v1128 = vmul.f32 %v1123, %v1127
    %vm1129 = vweird.f32 %v1122
    %vm1130 = vweird.f32 %v1123
    %vm1131 = vmor %vm1129, %vm1130
    %v1132 = vsel %vm1131, %v1123, %v1128
    %v1133 = vmul.f32 %v1099, %v1132
    %1135 = vset.pattern.permute.xlu0 0
    %1136 = vperm.xlu0 %1135, %v1133
    %v1137 = vpop.permute.xlu0 %1136
    %v1139 = vmul.f32 %v1108, %v1137
    %v1140 = vmul.f32 %v1109, %v1137
    %v1141 = vmul.f32 %v1110, %v1137
    %v1142 = vmul.f32 %v1111, %v1137
    %1144 = vset.pattern.permute.xlu0 0
    %1145 = vperm.xlu0 %1144, %v1101
    %v1146 = vpop.permute.xlu0 %1145
    %v1148 = vadd.f32 %v1139, %v1146
    %v1149 = vadd.f32 %v1140, %v1146
    %v1150 = vadd.f32 %v1141, %v1146
    %v1151 = vadd.f32 %v1142, %v1146
    %1152 = vst [vmem:[#allocation2] sm:$0xff] %v1148
    %1153 = vst [vmem:[#allocation2 + $0x8] sm:$0xff] %v1149
    %1154 = vst [vmem:[#allocation2 + $0x10] sm:$0xff] %v1150
    %1155 = vst [vmem:[#allocation2 + $0x18] sm:$0xff] %v1151
    // Predicated region
    $region14: #{tpu_custom_call.1} parent=1 // pred_check
      _
    $region15: #{tpu_custom_call.1} parent=1 // pred_check_branch
      %1157 = sbr.rel (0) target = $region17
    $region16: #{tpu_custom_call.1} parent=1 // pred_region
      %1159 = vsyncadd [#allocation3], 0
      %s1160 = sshll.u32 [#allocation2], 4
      %s1161 = int_to_ptr.vmem [resolvable:$true] %s1160
      %s1162 = sshll.u32 %s3, 4
      %s1163 = int_to_ptr.hbm [resolvable:$true] %s1162
      %1168 = dma.vmem_to_hbm [thread:$0]  %s1161, 512, %s1163, [#allocation3], 256, 256, 16
    $region17: #{tpu_custom_call.1} parent=1 // pred_fallthru
      _
    // Predicated region
    $region18: #{tpu_custom_call.1} parent=1 // pred_check
      _
    $region19: #{tpu_custom_call.1} parent=1 // pred_check_branch
      %1170 = sbr.rel (0) target = $region21
    $region20: #{tpu_custom_call.1} parent=1 // pred_region
      %1172 = dma.done [#allocation3], 512
    $region21: #{tpu_custom_call.1} parent=1 // pred_fallthru
      _
    %1173 = vsyncpa [#allocation3], 1

</llo_original>
